<compile_context>
chip_gen: v7x
topology: tpu7x:2x2x1
jax: 0.10.0
libtpu: 0.0.40
codegen_flags: <defaults>
</compile_context>

<pallas_src>
import functools

import jax
import jax.numpy as jnp
import numpy as np
from jax import lax
from jax.experimental import pallas as pl
from jax.experimental.pallas import tpu as pltpu

EPS = 1e-5
LANE = 128


def _round_up(n, m):
  return ((n + m - 1) // m) * m


# --------------------------------------------------------------------------
# One-time (host-side) construction of call-invariant kernel operands.
# --------------------------------------------------------------------------
def _conv_toeplitz(w_hwio, hin, win):
  """Expand a (kh,kw,cin,cout) VALID-conv kernel into a dense matmul matrix.

  Returns T with shape (hin*win*cin, hout*wout*cout) such that y_flat = x_flat @ T
  for channel-fastest flat NHWC layouts.
  """
  kh, kw, cin, cout = w_hwio.shape
  hout, wout = hin - kh + 1, win - kw + 1
  t = np.zeros((hin, win, cin, hout, wout, cout), np.float32)
  for h in range(hout):
    for w in range(wout):
      for dh in range(kh):
        for dw in range(kw):
          t[h + dh, w + dw, :, h, w, :] = w_hwio[dh, dw]
  return t.reshape(hin * win * cin, hout * wout * cout)


def _bn_stat_matrix(spatial, c, padded):
  """Fused per-channel reduce+broadcast matrix (0/1, exactly representable).

  (colsum @ M) * (1/cnt) gives the per-channel batch mean broadcast back to
  every lane.  Rows/cols for padded lanes (>= spatial*c) are zero so padding
  never pollutes the statistics.
  """
  sc = spatial * c
  lane = np.arange(padded)
  valid = lane < sc
  same = (lane[:, None] % c) == (lane[None, :] % c)
  return (same & valid[:, None] & valid[None, :]).astype(np.float32)


def _tile_pad(v, spatial, padded):
  """Tile a per-channel (C,) vector over `spatial` positions, zero-pad lanes."""
  v = np.asarray(v, np.float32)
  out = np.zeros((1, padded), np.float32)
  out[0, :spatial * v.size] = np.tile(v, spatial)
  return out


def prepare_downscaling(params, h, w):
  """Precompute ALL weight-derived kernel operands once (review item #1)."""
  w1 = np.asarray(params["w1"], np.float32)        # (kh, kw, Cin, Cm)
  w2 = np.asarray(params["w2"], np.float32)        # (kh, kw, Cm,  Cm)
  kh, kw = w1.shape[0], w1.shape[1]
  cm = w1.shape[3]

  p, q = h // 2, w // 2                            # after MaxPool2d(2)
  h1, w1s = p - kh + 1, q - kw + 1                 # after conv1 (VALID)
  h2, w2s = h1 - kh + 1, w1s - kw + 1              # after conv2 (VALID)

  sc1, sc2 = h1 * w1s * cm, h2 * w2s * cm
  sc1p, sc2p = _round_up(sc1, LANE), _round_up(sc2, LANE)   # 288->384, 128->128

  t1 = np.pad(_conv_toeplitz(w1, p, q), ((0, 0), (0, sc1p - sc1)))
  t2 = np.pad(_conv_toeplitz(w2, h1, w1s), ((0, sc1p - sc1), (0, sc2p - sc2)))

  prep = {
      "t1": t1,                                     # (P*Q*Cin, SC1p)
      "t2": t2,                                     # (SC1p,    SC2p)
      "m1": _bn_stat_matrix(h1 * w1s, cm, sc1p),    # (SC1p, SC1p) 0/1
      "m2": _bn_stat_matrix(h2 * w2s, cm, sc2p),    # (SC2p, SC2p) 0/1
      "g1t": _tile_pad(params["g1"], h1 * w1s, sc1p),
      "b1t": _tile_pad(params["be1"], h1 * w1s, sc1p),
      "g2t": _tile_pad(params["g2"], h2 * w2s, sc2p),
      "b2t": _tile_pad(params["be2"], h2 * w2s, sc2p),
  }
  # Move to device ONCE; subsequent jitted calls reuse the device buffers.
  return {k: jnp.asarray(v) for k, v in prep.items()}


# --------------------------------------------------------------------------
# Fused kernel: maxpool -> conv1(matmul) -> BN -> ReLU -> conv2 -> BN -> ReLU
# --------------------------------------------------------------------------
def downscaling_kernel(x00_ref, x01_ref, x10_ref, x11_ref,
                       t1_ref, m1_ref, g1_ref, b1_ref,
                       t2_ref, m2_ref, g2_ref, b2_ref,
                       o_ref, *, inv_cnt1, inv_cnt2):
  f32 = jnp.float32

  # ---- MaxPool2d(2): elementwise max of the four pool taps (pure VPU) ----
  pooled = jnp.maximum(jnp.maximum(x00_ref[...], x01_ref[...]),
                       jnp.maximum(x10_ref[...], x11_ref[...]))   # (N, P*Q*Cin)

  def conv_bn_relu(x, t_ref, m_ref, g_ref, b_ref, inv_cnt):
    # Conv as a single MXU matmul against the (padded) Toeplitz weight.
    # Conv bias omitted: cancelled exactly by the batch-mean subtraction.
    y = jnp.dot(x, t_ref[...], preferred_element_type=f32)        # (N, SCp)
    m = m_ref[...]
    # Training-mode BatchNorm (batch stats, biased var, centered form).
    # Per-channel reduce + broadcast fused into one lane-dense matmul.
    mean = jnp.dot(jnp.sum(y, axis=0, keepdims=True), m,
                   preferred_element_type=f32) * inv_cnt          # (1, SCp)
    cen = y - mean                                                # (N, SCp)
    var = jnp.dot(jnp.sum(cen * cen, axis=0, keepdims=True), m,
                  preferred_element_type=f32) * inv_cnt           # (1, SCp)
    scale = g_ref[...] * lax.rsqrt(var + EPS)                     # lane-dense
    return jnp.maximum(cen * scale + b_ref[...], 0.0)             # ReLU

  a1 = conv_bn_relu(pooled, t1_ref, m1_ref, g1_ref, b1_ref, inv_cnt1)
  o_ref[...] = conv_bn_relu(a1, t2_ref, m2_ref, g2_ref, b2_ref, inv_cnt2)


@functools.partial(jax.jit, static_argnames=("cm",))
def downscaling_forward(x_nchw, prep, *, cm):
  """PyTorch-equivalent forward. Input/output are NCHW float32."""
  N, Cin, H, W = x_nchw.shape
  P, Q = H // 2, W // 2
  H1, W1 = P - 2, Q - 2
  H2, W2 = H1 - 2, W1 - 2
  sc2 = H2 * W2 * cm
  sc2p = prep["t2"].shape[1]

  # glue: NCHW -> NHWC once; the four 2x2-pool taps go in as four separate
  # lane-dense operands (no stacked intermediate, review item #5).
  x = jnp.transpose(x_nchw, (0, 2, 3, 1)).astype(jnp.float32)
  flat = lambda t: t.reshape(N, P * Q * Cin)
  taps = (flat(x[:, 0::2, 0::2, :]), flat(x[:, 0::2, 1::2, :]),
          flat(x[:, 1::2, 0::2, :]), flat(x[:, 1::2, 1::2, :]))

  kernel = functools.partial(downscaling_kernel,
                             inv_cnt1=1.0 / float(N * H1 * W1),
                             inv_cnt2=1.0 / float(N * H2 * W2))
  vmem = pl.BlockSpec(memory_space=pltpu.MemorySpace.VMEM)
  out_flat = pl.pallas_call(
      kernel,
      out_shape=jax.ShapeDtypeStruct((N, sc2p), jnp.float32),
      in_specs=[vmem] * 12,
      out_specs=vmem,
  )(*taps,
    prep["t1"], prep["m1"], prep["g1t"], prep["b1t"],
    prep["t2"], prep["m2"], prep["g2t"], prep["b2t"])

  # glue: lane-dense flat output -> NHWC -> NCHW
  out = out_flat[:, :sc2].reshape(N, H2, W2, cm)
  return jnp.transpose(out, (0, 3, 1, 2))


# ---------------- pure-JAX reference (for correctness check) ----------------
def reference_forward(x_nchw, params):
  x = lax.reduce_window(x_nchw, -jnp.inf, lax.max, (1, 1, 2, 2), (1, 1, 2, 2),
                        "VALID")

  def conv_bn_relu(x, w_hwio, b, g, be):
    w_oihw = jnp.transpose(w_hwio, (3, 2, 0, 1))
    y = lax.conv_general_dilated(x, w_oihw, (1, 1), "VALID",
                                 dimension_numbers=("NCHW", "OIHW", "NCHW"))
    y = y + b.reshape(1, -1, 1, 1)
    mean = jnp.mean(y, axis=(0, 2, 3), keepdims=True)
    var = jnp.var(y, axis=(0, 2, 3), keepdims=True)  # biased, as in BN training
    y = (y - mean) * lax.rsqrt(var + EPS)
    y = y * g.reshape(1, -1, 1, 1) + be.reshape(1, -1, 1, 1)
    return jnp.maximum(y, 0.0)

  x = conv_bn_relu(x, params["w1"], params["b1"], params["g1"], params["be1"])
  x = conv_bn_relu(x, params["w2"], params["b2"], params["g2"], params["be2"])
  return x


if __name__ == "__main__":
  N, Cin, Cout, H, W = 2, 4, 8, 16, 16

  key = jax.random.PRNGKey(0)
  ks = jax.random.split(key, 9)
  params = {
      # conv weights stored HWIO (kh, kw, cin, cout)
      "w1": 0.2 * jax.random.normal(ks[0], (3, 3, Cin, Cout), jnp.float32),
      "b1": 0.1 * jax.random.normal(ks[1], (Cout,), jnp.float32),
      # BN affine params (PyTorch inits gamma=1, beta=0; perturbed so the
      # affine path is exercised — still deterministic).
      "g1": 1.0 + 0.1 * jax.random.normal(ks[2], (Cout,), jnp.float32),
      "be1": 0.1 * jax.random.normal(ks[3], (Cout,), jnp.float32),
      "w2": 0.2 * jax.random.normal(ks[4], (3, 3, Cout, Cout), jnp.float32),
      "b2": 0.1 * jax.random.normal(ks[5], (Cout,), jnp.float32),
      "g2": 1.0 + 0.1 * jax.random.normal(ks[6], (Cout,), jnp.float32),
      "be2": 0.1 * jax.random.normal(ks[7], (Cout,), jnp.float32),
  }
  x = jax.random.normal(ks[8], (N, Cin, H, W), jnp.float32)

  # Hoisted one-time preparation of all weight-derived operands (review #1).
  prep = prepare_downscaling(params, H, W)

  out = jax.block_until_ready(downscaling_forward(x, prep, cm=Cout))
  ref = jax.block_until_ready(reference_forward(x, params))

  assert out.shape == (N, Cout, H // 2 - 4, W // 2 - 4), out.shape
  np.testing.assert_allclose(np.asarray(out), np.asarray(ref),
                             rtol=2e-3, atol=2e-3)
  print("KERNEL_OK")
</pallas_src>

<mosaic_0001>
module attributes {stable_mosaic.version = 11 : i64} {
  func.func @downscaling_kernel(%arg0: memref<2x256xf32, #tpu.memory_space<vmem>>, %arg1: memref<2x256xf32, #tpu.memory_space<vmem>>, %arg2: memref<2x256xf32, #tpu.memory_space<vmem>>, %arg3: memref<2x256xf32, #tpu.memory_space<vmem>>, %arg4: memref<256x384xf32, #tpu.memory_space<vmem>>, %arg5: memref<384x384xf32, #tpu.memory_space<vmem>>, %arg6: memref<1x384xf32, #tpu.memory_space<vmem>>, %arg7: memref<1x384xf32, #tpu.memory_space<vmem>>, %arg8: memref<384x128xf32, #tpu.memory_space<vmem>>, %arg9: memref<128x128xf32, #tpu.memory_space<vmem>>, %arg10: memref<1x128xf32, #tpu.memory_space<vmem>>, %arg11: memref<1x128xf32, #tpu.memory_space<vmem>>, %arg12: memref<2x128xf32, #tpu.memory_space<vmem>>) attributes {dimension_semantics = [], scalar_prefetch = 0 : i64, scratch_operands = 0 : i64, tpu.core_type = #tpu.core_type<tc>} {
    %c0 = arith.constant 0 : index
    %c0_0 = arith.constant 0 : index
    %0 = vector.load %arg0[%c0, %c0_0] : memref<2x256xf32, #tpu.memory_space<vmem>>, vector<2x256xf32>
    %c0_1 = arith.constant 0 : index
    %c0_2 = arith.constant 0 : index
    %1 = vector.load %arg1[%c0_1, %c0_2] : memref<2x256xf32, #tpu.memory_space<vmem>>, vector<2x256xf32>
    %2 = arith.maximumf %0, %1 : vector<2x256xf32>
    %c0_3 = arith.constant 0 : index
    %c0_4 = arith.constant 0 : index
    %3 = vector.load %arg2[%c0_3, %c0_4] : memref<2x256xf32, #tpu.memory_space<vmem>>, vector<2x256xf32>
    %c0_5 = arith.constant 0 : index
    %c0_6 = arith.constant 0 : index
    %4 = vector.load %arg3[%c0_5, %c0_6] : memref<2x256xf32, #tpu.memory_space<vmem>>, vector<2x256xf32>
    %5 = arith.maximumf %3, %4 : vector<2x256xf32>
    %6 = arith.maximumf %2, %5 : vector<2x256xf32>
    %c0_7 = arith.constant 0 : index
    %c0_8 = arith.constant 0 : index
    %7 = vector.load %arg4[%c0_7, %c0_8] : memref<256x384xf32, #tpu.memory_space<vmem>>, vector<256x384xf32>
    %cst = arith.constant dense<0.000000e+00> : vector<2x384xf32>
    %8 = tpu.matmul %6, %7, %cst {dimension_numbers = #tpu.dot_dimension_numbers<[1], [0], [0], [1], [0, 0, 1, 1], [], []>} : vector<2x256xf32>, vector<256x384xf32>, vector<2x384xf32> -> vector<2x384xf32>
    %c0_9 = arith.constant 0 : index
    %c0_10 = arith.constant 0 : index
    %9 = vector.load %arg5[%c0_9, %c0_10] : memref<384x384xf32, #tpu.memory_space<vmem>>, vector<384x384xf32>
    %cst_11 = arith.constant dense<0.000000e+00> : vector<384xf32>
    %10 = vector.multi_reduction <add>, %8, %cst_11 [0] : vector<2x384xf32> to vector<384xf32>
    %11 = vector.shape_cast %10 : vector<384xf32> to vector<1x384xf32>
    %cst_12 = arith.constant dense<0.000000e+00> : vector<1x384xf32>
    %12 = tpu.matmul %11, %9, %cst_12 {dimension_numbers = #tpu.dot_dimension_numbers<[1], [0], [0], [1], [0, 0, 1, 1], [], []>} : vector<1x384xf32>, vector<384x384xf32>, vector<1x384xf32> -> vector<1x384xf32>
    %cst_13 = arith.constant 0.013888889 : f32
    %13 = vector.broadcast %cst_13 : f32 to vector<1x384xf32>
    %14 = arith.mulf %12, %13 : vector<1x384xf32>
    %15 = vector.broadcast %14 : vector<1x384xf32> to vector<2x384xf32>
    %16 = arith.subf %8, %15 : vector<2x384xf32>
    %17 = arith.mulf %16, %16 : vector<2x384xf32>
    %cst_14 = arith.constant dense<0.000000e+00> : vector<384xf32>
    %18 = vector.multi_reduction <add>, %17, %cst_14 [0] : vector<2x384xf32> to vector<384xf32>
    %19 = vector.shape_cast %18 : vector<384xf32> to vector<1x384xf32>
    %cst_15 = arith.constant dense<0.000000e+00> : vector<1x384xf32>
    %20 = tpu.matmul %19, %9, %cst_15 {dimension_numbers = #tpu.dot_dimension_numbers<[1], [0], [0], [1], [0, 0, 1, 1], [], []>} : vector<1x384xf32>, vector<384x384xf32>, vector<1x384xf32> -> vector<1x384xf32>
    %cst_16 = arith.constant 0.013888889 : f32
    %21 = vector.broadcast %cst_16 : f32 to vector<1x384xf32>
    %22 = arith.mulf %20, %21 : vector<1x384xf32>
    %c0_17 = arith.constant 0 : index
    %c0_18 = arith.constant 0 : index
    %23 = vector.load %arg6[%c0_17, %c0_18] : memref<1x384xf32, #tpu.memory_space<vmem>>, vector<1x384xf32>
    %cst_19 = arith.constant 9.99999974E-6 : f32
    %24 = vector.broadcast %cst_19 : f32 to vector<1x384xf32>
    %25 = arith.addf %22, %24 : vector<1x384xf32>
    %26 = math.rsqrt %25 : vector<1x384xf32>
    %27 = arith.mulf %23, %26 : vector<1x384xf32>
    %28 = vector.broadcast %27 : vector<1x384xf32> to vector<2x384xf32>
    %29 = arith.mulf %16, %28 : vector<2x384xf32>
    %c0_20 = arith.constant 0 : index
    %c0_21 = arith.constant 0 : index
    %30 = vector.load %arg7[%c0_20, %c0_21] : memref<1x384xf32, #tpu.memory_space<vmem>>, vector<1x384xf32>
    %31 = vector.broadcast %30 : vector<1x384xf32> to vector<2x384xf32>
    %32 = arith.addf %29, %31 : vector<2x384xf32>
    %cst_22 = arith.constant 0.000000e+00 : f32
    %33 = vector.broadcast %cst_22 : f32 to vector<2x384xf32>
    %34 = arith.maximumf %32, %33 : vector<2x384xf32>
    %c0_23 = arith.constant 0 : index
    %c0_24 = arith.constant 0 : index
    %35 = vector.load %arg8[%c0_23, %c0_24] : memref<384x128xf32, #tpu.memory_space<vmem>>, vector<384x128xf32>
    %cst_25 = arith.constant dense<0.000000e+00> : vector<2x128xf32>
    %36 = tpu.matmul %34, %35, %cst_25 {dimension_numbers = #tpu.dot_dimension_numbers<[1], [0], [0], [1], [0, 0, 1, 1], [], []>} : vector<2x384xf32>, vector<384x128xf32>, vector<2x128xf32> -> vector<2x128xf32>
    %c0_26 = arith.constant 0 : index
    %c0_27 = arith.constant 0 : index
    %37 = vector.load %arg9[%c0_26, %c0_27] : memref<128x128xf32, #tpu.memory_space<vmem>>, vector<128x128xf32>
    %cst_28 = arith.constant dense<0.000000e+00> : vector<128xf32>
    %38 = vector.multi_reduction <add>, %36, %cst_28 [0] : vector<2x128xf32> to vector<128xf32>
    %39 = vector.shape_cast %38 : vector<128xf32> to vector<1x128xf32>
    %cst_29 = arith.constant dense<0.000000e+00> : vector<1x128xf32>
    %40 = tpu.matmul %39, %37, %cst_29 {dimension_numbers = #tpu.dot_dimension_numbers<[1], [0], [0], [1], [0, 0, 1, 1], [], []>} : vector<1x128xf32>, vector<128x128xf32>, vector<1x128xf32> -> vector<1x128xf32>
    %cst_30 = arith.constant 3.125000e-02 : f32
    %41 = vector.broadcast %cst_30 : f32 to vector<1x128xf32>
    %42 = arith.mulf %40, %41 : vector<1x128xf32>
    %43 = vector.broadcast %42 : vector<1x128xf32> to vector<2x128xf32>
    %44 = arith.subf %36, %43 : vector<2x128xf32>
    %45 = arith.mulf %44, %44 : vector<2x128xf32>
    %cst_31 = arith.constant dense<0.000000e+00> : vector<128xf32>
    %46 = vector.multi_reduction <add>, %45, %cst_31 [0] : vector<2x128xf32> to vector<128xf32>
    %47 = vector.shape_cast %46 : vector<128xf32> to vector<1x128xf32>
    %cst_32 = arith.constant dense<0.000000e+00> : vector<1x128xf32>
    %48 = tpu.matmul %47, %37, %cst_32 {dimension_numbers = #tpu.dot_dimension_numbers<[1], [0], [0], [1], [0, 0, 1, 1], [], []>} : vector<1x128xf32>, vector<128x128xf32>, vector<1x128xf32> -> vector<1x128xf32>
    %cst_33 = arith.constant 3.125000e-02 : f32
    %49 = vector.broadcast %cst_33 : f32 to vector<1x128xf32>
    %50 = arith.mulf %48, %49 : vector<1x128xf32>
    %c0_34 = arith.constant 0 : index
    %c0_35 = arith.constant 0 : index
    %51 = vector.load %arg10[%c0_34, %c0_35] : memref<1x128xf32, #tpu.memory_space<vmem>>, vector<1x128xf32>
    %cst_36 = arith.constant 9.99999974E-6 : f32
    %52 = vector.broadcast %cst_36 : f32 to vector<1x128xf32>
    %53 = arith.addf %50, %52 : vector<1x128xf32>
    %54 = math.rsqrt %53 : vector<1x128xf32>
    %55 = arith.mulf %51, %54 : vector<1x128xf32>
    %56 = vector.broadcast %55 : vector<1x128xf32> to vector<2x128xf32>
    %57 = arith.mulf %44, %56 : vector<2x128xf32>
    %c0_37 = arith.constant 0 : index
    %c0_38 = arith.constant 0 : index
    %58 = vector.load %arg11[%c0_37, %c0_38] : memref<1x128xf32, #tpu.memory_space<vmem>>, vector<1x128xf32>
    %59 = vector.broadcast %58 : vector<1x128xf32> to vector<2x128xf32>
    %60 = arith.addf %57, %59 : vector<2x128xf32>
    %cst_39 = arith.constant 0.000000e+00 : f32
    %61 = vector.broadcast %cst_39 : f32 to vector<2x128xf32>
    %62 = arith.maximumf %60, %61 : vector<2x128xf32>
    %c0_40 = arith.constant 0 : index
    %c0_41 = arith.constant 0 : index
    %63 = vector.load %arg12[%c0_40, %c0_41] : memref<2x128xf32, #tpu.memory_space<vmem>>, vector<2x128xf32>
    tpu.vector_store %arg12[%c0_40, %c0_41], %62 {strides = array<i32>} : memref<2x128xf32, #tpu.memory_space<vmem>>, vector<2x128xf32>,
    return
  }
}

</mosaic_0001>

<llo_original>
// kernel: downscaling_forward.1
$region0: #{downscaling_forward.1}
  #allocation0 [shape = 'u32[]', space=smem, size = 0x4, offset = 0x4, fixed_abs, tag = 'smem constant byte address 0x4 - core index']
  #allocation1 [shape = 'u32[144,128]{1,0:T(1,128)}', space=vmem, size = 0x12000, scoped, tag = 'internal scratch']
  %s0 = inlined_call_operand.vmem [shape: f32[2,256], index: 0, kind: input, shape index: {}]
  %s1 = inlined_call_operand.vmem [shape: f32[2,256], index: 1, kind: input, shape index: {}]
  %s2 = inlined_call_operand.vmem [shape: f32[2,256], index: 2, kind: input, shape index: {}]
  %s3 = inlined_call_operand.vmem [shape: f32[2,256], index: 3, kind: input, shape index: {}]
  %s4 = inlined_call_operand.hbm [shape: f32[256,384], index: 4, kind: input, shape index: {}]
  %s5 = inlined_call_operand.vmem [shape: f32[384,384], index: 5, kind: input, shape index: {}]
  %s6 = inlined_call_operand.vmem [shape: f32[1,384], index: 6, kind: input, shape index: {}]
  %s7 = inlined_call_operand.vmem [shape: f32[1,384], index: 7, kind: input, shape index: {}]
  %s8 = inlined_call_operand.vmem [shape: f32[384,128], index: 8, kind: input, shape index: {}]
  %s9 = inlined_call_operand.vmem [shape: f32[128,128], index: 9, kind: input, shape index: {}]
  %s10 = inlined_call_operand.vmem [shape: f32[1,128], index: 10, kind: input, shape index: {}]
  %s11 = inlined_call_operand.vmem [shape: f32[1,128], index: 11, kind: input, shape index: {}]
  %s12 = inlined_call_operand.vmem [shape: f32[2,128], index: 12, kind: output, shape index: {}]
  %s13 = sld [smem:[#allocation0]]
  $region62: #{downscaling_forward.1} parent=0
    _
  %s15 = ssub.s32 1, %s13
  %s16 = scalar_select 0, %s15, %s13
  $region1: #{downscaling_forward.1} parent=0
    #allocation2 [shape = 'u8[393216]{0}', space=vmem, size = 0x60000, scoped, tag = 'input window, operand 4, single buffered']
    #allocation3 [shape = 's32[1]{0}', space=sflag, size = 0x4, scoped, tag = 'scoped memory for downscaling_forward.1']
    %17 = vsyncpa [#allocation3], 0
    // Predicated region
    $region2: #{downscaling_forward.1} parent=1 // pred_check
      _
    $region3: #{downscaling_forward.1} parent=1 // pred_check_branch
      %19 = sbr.rel (0) target = $region5
    $region4: #{downscaling_forward.1} parent=1 // pred_region
      _
    $region5: #{downscaling_forward.1} parent=1 // pred_fallthru
      _
    // Predicated region
    $region6: #{downscaling_forward.1} parent=1 // pred_check
      _
    $region7: #{downscaling_forward.1} parent=1 // pred_check_branch
      %21 = sbr.rel (0) target = $region9
    $region8: #{downscaling_forward.1} parent=1 // pred_region
      _
    $region9: #{downscaling_forward.1} parent=1 // pred_fallthru
      _
    // Predicated region
    $region10: #{downscaling_forward.1} parent=1 // pred_check
      _
    $region11: #{downscaling_forward.1} parent=1 // pred_check_branch
      %23 = sbr.rel (0) target = $region13
    $region12: #{downscaling_forward.1} parent=1 // pred_region
      _
    $region13: #{downscaling_forward.1} parent=1 // pred_fallthru
      _
    // Predicated region
    $region14: #{downscaling_forward.1} parent=1 // pred_check
      _
    $region15: #{downscaling_forward.1} parent=1 // pred_check_branch
      %25 = sbr.rel (0) target = $region17
    $region16: #{downscaling_forward.1} parent=1 // pred_region
      _
    $region17: #{downscaling_forward.1} parent=1 // pred_fallthru
      _
    // Predicated region
    $region18: #{downscaling_forward.1} parent=1 // pred_check
      _
    $region19: #{downscaling_forward.1} parent=1 // pred_check_branch
      %27 = sbr.rel (0) target = $region21
    $region20: #{downscaling_forward.1} parent=1 // pred_region
      %s29 = ssub.s32 12288, 12288
      %30 = vsyncadd [#allocation3], %s29
      %s31 = sshll.u32 [#allocation2], 4
      %s32 = int_to_ptr.vmem [resolvable:$true] %s31
      %37 = dma.hbm_to_vmem [thread:$0]  %s4, 12288, %s32, [#allocation3], 384, 384, 24
    $region21: #{downscaling_forward.1} parent=1 // pred_fallthru
      _
    // Predicated region
    $region22: #{downscaling_forward.1} parent=1 // pred_check
      _
    $region23: #{downscaling_forward.1} parent=1 // pred_check_branch
      %39 = sbr.rel (0) target = $region25
    $region24: #{downscaling_forward.1} parent=1 // pred_region
      _
    $region25: #{downscaling_forward.1} parent=1 // pred_fallthru
      _
    // Predicated region
    $region26: #{downscaling_forward.1} parent=1 // pred_check
      _
    $region27: #{downscaling_forward.1} parent=1 // pred_check_branch
      %41 = sbr.rel (0) target = $region29
    $region28: #{downscaling_forward.1} parent=1 // pred_region
      _
    $region29: #{downscaling_forward.1} parent=1 // pred_fallthru
      _
    // Predicated region
    $region30: #{downscaling_forward.1} parent=1 // pred_check
      _
    $region31: #{downscaling_forward.1} parent=1 // pred_check_branch
      %43 = sbr.rel (0) target = $region33
    $region32: #{downscaling_forward.1} parent=1 // pred_region
      _
    $region33: #{downscaling_forward.1} parent=1 // pred_fallthru
      _
    // Predicated region
    $region34: #{downscaling_forward.1} parent=1 // pred_check
      _
    $region35: #{downscaling_forward.1} parent=1 // pred_check_branch
      %45 = sbr.rel (0) target = $region37
    $region36: #{downscaling_forward.1} parent=1 // pred_region
      _
    $region37: #{downscaling_forward.1} parent=1 // pred_fallthru
      _
    // Predicated region
    $region38: #{downscaling_forward.1} parent=1 // pred_check
      _
    $region39: #{downscaling_forward.1} parent=1 // pred_check_branch
      %47 = sbr.rel (0) target = $region41
    $region40: #{downscaling_forward.1} parent=1 // pred_region
      _
    $region41: #{downscaling_forward.1} parent=1 // pred_fallthru
      _
    // Predicated region
    $region42: #{downscaling_forward.1} parent=1 // pred_check
      _
    $region43: #{downscaling_forward.1} parent=1 // pred_check_branch
      %49 = sbr.rel (0) target = $region45
    $region44: #{downscaling_forward.1} parent=1 // pred_region
      _
    $region45: #{downscaling_forward.1} parent=1 // pred_fallthru
      _
    // Predicated region
    $region46: #{downscaling_forward.1} parent=1 // pred_check
      _
    $region47: #{downscaling_forward.1} parent=1 // pred_check_branch
      %51 = sbr.rel (0) target = $region49
    $region48: #{downscaling_forward.1} parent=1 // pred_region
      _
    $region49: #{downscaling_forward.1} parent=1 // pred_fallthru
      _
    // Predicated region
    $region50: #{downscaling_forward.1} parent=1 // pred_check
      _
    $region51: #{downscaling_forward.1} parent=1 // pred_check_branch
      %53 = sbr.rel (0) target = $region53
    $region52: #{downscaling_forward.1} parent=1 // pred_region
      %54 = dma.done [#allocation3], 12288
    $region53: #{downscaling_forward.1} parent=1 // pred_fallthru
      _
    %v55 = vld [vmem:[%s0] sm:$0xf]
    %v56 = vld [vmem:[%s1] sm:$0xf]
    %v57 = vmax.f32 %v55, %v56
    %v58 = vld [vmem:[%s2] sm:$0xf]
    %v59 = vld [vmem:[%s3] sm:$0xf]
    %v60 = vmax.f32 %v58, %v59
    %v61 = vmax.f32 %v57, %v60
    %v62 = vld [vmem:[#allocation2] sm:$0xff]
    %v63 = vld [vmem:[#allocation2 + $0x8] sm:$0xff]
    %v64 = vld [vmem:[#allocation2 + $0x10] sm:$0xff]
    %v65 = vld [vmem:[#allocation2 + $0x18] sm:$0xff]
    %v66 = vld [vmem:[#allocation2 + $0x20] sm:$0xff]
    %v67 = vld [vmem:[#allocation2 + $0x28] sm:$0xff]
    %v68 = vld [vmem:[#allocation2 + $0x30] sm:$0xff]
    %v69 = vld [vmem:[#allocation2 + $0x38] sm:$0xff]
    %v70 = vld [vmem:[#allocation2 + $0x40] sm:$0xff]
    %v71 = vld [vmem:[#allocation2 + $0x48] sm:$0xff]
    %v72 = vld [vmem:[#allocation2 + $0x50] sm:$0xff]
    %v73 = vld [vmem:[#allocation2 + $0x58] sm:$0xff]
    %v74 = vld [vmem:[#allocation2 + $0x60] sm:$0xff]
    %v75 = vld [vmem:[#allocation2 + $0x68] sm:$0xff]
    %v76 = vld [vmem:[#allocation2 + $0x70] sm:$0xff]
    %v77 = vld [vmem:[#allocation2 + $0x78] sm:$0xff]
    %v78 = vld [vmem:[#allocation2 + $0x80] sm:$0xff]
    %v79 = vld [vmem:[#allocation2 + $0x88] sm:$0xff]
    %v80 = vld [vmem:[#allocation2 + $0x90] sm:$0xff]
    %v81 = vld [vmem:[#allocation2 + $0x98] sm:$0xff]
    %v82 = vld [vmem:[#allocation2 + $0xa0] sm:$0xff]
    %v83 = vld [vmem:[#allocation2 + $0xa8] sm:$0xff]
    %v84 = vld [vmem:[#allocation2 + $0xb0] sm:$0xff]
    %v85 = vld [vmem:[#allocation2 + $0xb8] sm:$0xff]
    %v86 = vld [vmem:[#allocation2 + $0xc0] sm:$0xff]
    %v87 = vld [vmem:[#allocation2 + $0xc8] sm:$0xff]
    %v88 = vld [vmem:[#allocation2 + $0xd0] sm:$0xff]
    %v89 = vld [vmem:[#allocation2 + $0xd8] sm:$0xff]
    %v90 = vld [vmem:[#allocation2 + $0xe0] sm:$0xff]
    %v91 = vld [vmem:[#allocation2 + $0xe8] sm:$0xff]
    %v92 = vld [vmem:[#allocation2 + $0xf0] sm:$0xff]
    %v93 = vld [vmem:[#allocation2 + $0xf8] sm:$0xff]
    %v94 = vld [vmem:[#allocation2 + $0x100] sm:$0xff]
    %v95 = vld [vmem:[#allocation2 + $0x108] sm:$0xff]
    %v96 = vld [vmem:[#allocation2 + $0x110] sm:$0xff]
    %v97 = vld [vmem:[#allocation2 + $0x118] sm:$0xff]
    %v98 = vld [vmem:[#allocation2 + $0x120] sm:$0xff]
    %v99 = vld [vmem:[#allocation2 + $0x128] sm:$0xff]
    %v100 = vld [vmem:[#allocation2 + $0x130] sm:$0xff]
    %v101 = vld [vmem:[#allocation2 + $0x138] sm:$0xff]
    %v102 = vld [vmem:[#allocation2 + $0x140] sm:$0xff]
    %v103 = vld [vmem:[#allocation2 + $0x148] sm:$0xff]
    %v104 = vld [vmem:[#allocation2 + $0x150] sm:$0xff]
    %v105 = vld [vmem:[#allocation2 + $0x158] sm:$0xff]
    %v106 = vld [vmem:[#allocation2 + $0x160] sm:$0xff]
    %v107 = vld [vmem:[#allocation2 + $0x168] sm:$0xff]
    %v108 = vld [vmem:[#allocation2 + $0x170] sm:$0xff]
    %v109 = vld [vmem:[#allocation2 + $0x178] sm:$0xff]
    %v110 = vld [vmem:[#allocation2 + $0x180] sm:$0xff]
    %v111 = vld [vmem:[#allocation2 + $0x188] sm:$0xff]
    %v112 = vld [vmem:[#allocation2 + $0x190] sm:$0xff]
    %v113 = vld [vmem:[#allocation2 + $0x198] sm:$0xff]
    %v114 = vld [vmem:[#allocation2 + $0x1a0] sm:$0xff]
    %v115 = vld [vmem:[#allocation2 + $0x1a8] sm:$0xff]
    %v116 = vld [vmem:[#allocation2 + $0x1b0] sm:$0xff]
    %v117 = vld [vmem:[#allocation2 + $0x1b8] sm:$0xff]
    %v118 = vld [vmem:[#allocation2 + $0x1c0] sm:$0xff]
    %v119 = vld [vmem:[#allocation2 + $0x1c8] sm:$0xff]
    %v120 = vld [vmem:[#allocation2 + $0x1d0] sm:$0xff]
    %v121 = vld [vmem:[#allocation2 + $0x1d8] sm:$0xff]
    %v122 = vld [vmem:[#allocation2 + $0x1e0] sm:$0xff]
    %v123 = vld [vmem:[#allocation2 + $0x1e8] sm:$0xff]
    %v124 = vld [vmem:[#allocation2 + $0x1f0] sm:$0xff]
    %v125 = vld [vmem:[#allocation2 + $0x1f8] sm:$0xff]
    %v126 = vld [vmem:[#allocation2 + $0x200] sm:$0xff]
    %v127 = vld [vmem:[#allocation2 + $0x208] sm:$0xff]
    %v128 = vld [vmem:[#allocation2 + $0x210] sm:$0xff]
    %v129 = vld [vmem:[#allocation2 + $0x218] sm:$0xff]
    %v130 = vld [vmem:[#allocation2 + $0x220] sm:$0xff]
    %v131 = vld [vmem:[#allocation2 + $0x228] sm:$0xff]
    %v132 = vld [vmem:[#allocation2 + $0x230] sm:$0xff]
    %v133 = vld [vmem:[#allocation2 + $0x238] sm:$0xff]
    %v134 = vld [vmem:[#allocation2 + $0x240] sm:$0xff]
    %v135 = vld [vmem:[#allocation2 + $0x248] sm:$0xff]
    %v136 = vld [vmem:[#allocation2 + $0x250] sm:$0xff]
    %v137 = vld [vmem:[#allocation2 + $0x258] sm:$0xff]
    %v138 = vld [vmem:[#allocation2 + $0x260] sm:$0xff]
    %v139 = vld [vmem:[#allocation2 + $0x268] sm:$0xff]
    %v140 = vld [vmem:[#allocation2 + $0x270] sm:$0xff]
    %v141 = vld [vmem:[#allocation2 + $0x278] sm:$0xff]
    %v142 = vld [vmem:[#allocation2 + $0x280] sm:$0xff]
    %v143 = vld [vmem:[#allocation2 + $0x288] sm:$0xff]
    %v144 = vld [vmem:[#allocation2 + $0x290] sm:$0xff]
    %v145 = vld [vmem:[#allocation2 + $0x298] sm:$0xff]
    %v146 = vld [vmem:[#allocation2 + $0x2a0] sm:$0xff]
    %v147 = vld [vmem:[#allocation2 + $0x2a8] sm:$0xff]
    %v148 = vld [vmem:[#allocation2 + $0x2b0] sm:$0xff]
    %v149 = vld [vmem:[#allocation2 + $0x2b8] sm:$0xff]
    %v150 = vld [vmem:[#allocation2 + $0x2c0] sm:$0xff]
    %v151 = vld [vmem:[#allocation2 + $0x2c8] sm:$0xff]
    %v152 = vld [vmem:[#allocation2 + $0x2d0] sm:$0xff]
    %v153 = vld [vmem:[#allocation2 + $0x2d8] sm:$0xff]
    %v154 = vld [vmem:[#allocation2 + $0x2e0] sm:$0xff]
    %v155 = vld [vmem:[#allocation2 + $0x2e8] sm:$0xff]
    %v156 = vld [vmem:[#allocation2 + $0x2f0] sm:$0xff]
    %v157 = vld [vmem:[#allocation2 + $0x2f8] sm:$0xff]
    %v160 = vunpack.c.l.s4 1983009808
    %v161 = vunpack.c.0.s8 %v160
    %v162 = vlaneseq
    %v163 = vshrl.u32 %v162, 7
    %v164 = vsub.s32 %v161, %v163
    %v165 = vrot.slane %v61, %v164
    %v166 = vcombine.high %v165, %v165
    %169 = vmatprep.subr.mxu0 %v63
    %170 = vmatpush1.msra.mxu0 %v62
    %171 = vmatprep.subr.mxu0 %v66
    %172 = vmatpush1.msra.mxu0 %v65
    %173 = vmatprep.subr.mxu0 %v69
    %174 = vmatpush1.msra.mxu0 %v68
    %175 = vmatprep.subr.mxu0 %v72
    %176 = vmatpush1.msra.mxu0 %v71
    %177 = vmatprep.subr.mxu0 %v75
    %178 = vmatpush1.msra.mxu0 %v74
    %179 = vmatprep.subr.mxu0 %v78
    %180 = vmatpush1.msra.mxu0 %v77
    %181 = vmatprep.subr.mxu0 %v81
    %182 = vmatpush1.msra.mxu0 %v80
    %183 = vmatprep.subr.mxu0 %v84
    %184 = vmatpush1.msra.mxu0 %v83
    %185 = vmatprep.subr.mxu0 %v87
    %186 = vmatpush1.msra.mxu0 %v86
    %187 = vmatprep.subr.mxu0 %v90
    %188 = vmatpush1.msra.mxu0 %v89
    %189 = vmatprep.subr.mxu0 %v93
    %190 = vmatpush1.msra.mxu0 %v92
    %191 = vmatprep.subr.mxu0 %v96
    %192 = vmatpush1.msra.mxu0 %v95
    %193 = vmatprep.subr.mxu0 %v99
    %194 = vmatpush1.msra.mxu0 %v98
    %195 = vmatprep.subr.mxu0 %v102
    %196 = vmatpush1.msra.mxu0 %v101
    %197 = vmatprep.subr.mxu0 %v105
    %198 = vmatpush1.msra.mxu0 %v104
    %199 = vmatprep.subr.mxu0 %v108
    %200 = vmatpush1.msra.mxu0 %v107
    %201 = vmatprep.subr.mxu0 %v111
    %202 = vmatpush1.msra.mxu0 %v110
    %203 = vmatprep.subr.mxu0 %v114
    %204 = vmatpush1.msra.mxu0 %v113
    %205 = vmatprep.subr.mxu0 %v117
    %206 = vmatpush1.msra.mxu0 %v116
    %207 = vmatprep.subr.mxu0 %v120
    %208 = vmatpush1.msra.mxu0 %v119
    %209 = vmatprep.subr.mxu0 %v123
    %210 = vmatpush1.msra.mxu0 %v122
    %211 = vmatprep.subr.mxu0 %v126
    %212 = vmatpush1.msra.mxu0 %v125
    %213 = vmatprep.subr.mxu0 %v129
    %214 = vmatpush1.msra.mxu0 %v128
    %215 = vmatprep.subr.mxu0 %v132
    %216 = vmatpush1.msra.mxu0 %v131
    %217 = vmatprep.subr.mxu0 %v135
    %218 = vmatpush1.msra.mxu0 %v134
    %219 = vmatprep.subr.mxu0 %v138
    %220 = vmatpush1.msra.mxu0 %v137
    %221 = vmatprep.subr.mxu0 %v141
    %222 = vmatpush1.msra.mxu0 %v140
    %223 = vmatprep.subr.mxu0 %v144
    %224 = vmatpush1.msra.mxu0 %v143
    %225 = vmatprep.subr.mxu0 %v147
    %226 = vmatpush1.msra.mxu0 %v146
    %227 = vmatprep.subr.mxu0 %v150
    %228 = vmatpush1.msra.mxu0 %v149
    %229 = vmatprep.subr.mxu0 %v153
    %230 = vmatpush1.msra.mxu0 %v152
    %231 = vmatprep.subr.mxu0 %v156
    %232 = vmatpush1.msra.mxu0 %v155
    %233 = vmatprep.mubr.f32.mxu0 %v166
    %234 = vmatmul.mubr.f32.gmra.mrb[0].mxu0 %v165
    %v235 = vpop.f32.mrb[0].mxu0
    %v236 = vadd.f32 0.0, %v235
    %v237 = vpop.f32.mrb[0].mxu0
    %v238 = vadd.f32 0.0, %v237
    %239 = vdwg.mxu0
    %240 = vmatprep.subr.mxu0 0.0
    %241 = vmatpush1.msra.mxu0 %v64
    %242 = vmatprep.subr.mxu0 0.0
    %243 = vmatpush1.msra.mxu0 %v67
    %244 = vmatprep.subr.mxu0 0.0
    %245 = vmatpush1.msra.mxu0 %v70
    %246 = vmatprep.subr.mxu0 0.0
    %247 = vmatpush1.msra.mxu0 %v73
    %248 = vmatprep.subr.mxu0 0.0
    %249 = vmatpush1.msra.mxu0 %v76
    %250 = vmatprep.subr.mxu0 0.0
    %251 = vmatpush1.msra.mxu0 %v79
    %252 = vmatprep.subr.mxu0 0.0
    %253 = vmatpush1.msra.mxu0 %v82
    %254 = vmatprep.subr.mxu0 0.0
    %255 = vmatpush1.msra.mxu0 %v85
    %256 = vmatprep.subr.mxu0 0.0
    %257 = vmatpush1.msra.mxu0 %v88
    %258 = vmatprep.subr.mxu0 0.0
    %259 = vmatpush1.msra.mxu0 %v91
    %260 = vmatprep.subr.mxu0 0.0
    %261 = vmatpush1.msra.mxu0 %v94
    %262 = vmatprep.subr.mxu0 0.0
    %263 = vmatpush1.msra.mxu0 %v97
    %264 = vmatprep.subr.mxu0 0.0
    %265 = vmatpush1.msra.mxu0 %v100
    %266 = vmatprep.subr.mxu0 0.0
    %267 = vmatpush1.msra.mxu0 %v103
    %268 = vmatprep.subr.mxu0 0.0
    %269 = vmatpush1.msra.mxu0 %v106
    %270 = vmatprep.subr.mxu0 0.0
    %271 = vmatpush1.msra.mxu0 %v109
    %272 = vmatprep.subr.mxu0 0.0
    %273 = vmatpush1.msra.mxu0 %v112
    %274 = vmatprep.subr.mxu0 0.0
    %275 = vmatpush1.msra.mxu0 %v115
    %276 = vmatprep.subr.mxu0 0.0
    %277 = vmatpush1.msra.mxu0 %v118
    %278 = vmatprep.subr.mxu0 0.0
    %279 = vmatpush1.msra.mxu0 %v121
    %280 = vmatprep.subr.mxu0 0.0
    %281 = vmatpush1.msra.mxu0 %v124
    %282 = vmatprep.subr.mxu0 0.0
    %283 = vmatpush1.msra.mxu0 %v127
    %284 = vmatprep.subr.mxu0 0.0
    %285 = vmatpush1.msra.mxu0 %v130
    %286 = vmatprep.subr.mxu0 0.0
    %287 = vmatpush1.msra.mxu0 %v133
    %288 = vmatprep.subr.mxu0 0.0
    %289 = vmatpush1.msra.mxu0 %v136
    %290 = vmatprep.subr.mxu0 0.0
    %291 = vmatpush1.msra.mxu0 %v139
    %292 = vmatprep.subr.mxu0 0.0
    %293 = vmatpush1.msra.mxu0 %v142
    %294 = vmatprep.subr.mxu0 0.0
    %295 = vmatpush1.msra.mxu0 %v145
    %296 = vmatprep.subr.mxu0 0.0
    %297 = vmatpush1.msra.mxu0 %v148
    %298 = vmatprep.subr.mxu0 0.0
    %299 = vmatpush1.msra.mxu0 %v151
    %300 = vmatprep.subr.mxu0 0.0
    %301 = vmatpush1.msra.mxu0 %v154
    %302 = vmatprep.subr.mxu0 0.0
    %303 = vmatpush1.msra.mxu0 %v157
    %304 = vmatprep.mubr.f32.mxu0 %v166
    %305 = vmatmul.mubr.f32.gmra.mrb[0].mxu0 %v165
    %v306 = vpop.f32.mrb[0].mxu0
    %v307 = vadd.f32 0.0, %v306
    %v308 = vpop.f32.mrb[0].mxu0
    %309 = vdwg.mxu0
    %v310 = vld [vmem:[%s5] sm:$0xff]
    %v311 = vld [vmem:[%s5 + $0x8] sm:$0xff]
    %v312 = vld [vmem:[%s5 + $0x10] sm:$0xff]
    %v313 = vld [vmem:[%s5 + $0x18] sm:$0xff]
    %v314 = vld [vmem:[%s5 + $0x20] sm:$0xff]
    %v315 = vld [vmem:[%s5 + $0x28] sm:$0xff]
    %v316 = vld [vmem:[%s5 + $0x30] sm:$0xff]
    %v317 = vld [vmem:[%s5 + $0x38] sm:$0xff]
    %v318 = vld [vmem:[%s5 + $0x40] sm:$0xff]
    %v319 = vld [vmem:[%s5 + $0x48] sm:$0xff]
    %v320 = vld [vmem:[%s5 + $0x50] sm:$0xff]
    %v321 = vld [vmem:[%s5 + $0x58] sm:$0xff]
    %v322 = vld [vmem:[%s5 + $0x60] sm:$0xff]
    %v323 = vld [vmem:[%s5 + $0x68] sm:$0xff]
    %v324 = vld [vmem:[%s5 + $0x70] sm:$0xff]
    %v325 = vld [vmem:[%s5 + $0x78] sm:$0xff]
    %v326 = vld [vmem:[%s5 + $0x80] sm:$0xff]
    %v327 = vld [vmem:[%s5 + $0x88] sm:$0xff]
    %v328 = vld [vmem:[%s5 + $0x90] sm:$0xff]
    %v329 = vld [vmem:[%s5 + $0x98] sm:$0xff]
    %v330 = vld [vmem:[%s5 + $0xa0] sm:$0xff]
    %v331 = vld [vmem:[%s5 + $0xa8] sm:$0xff]
    %v332 = vld [vmem:[%s5 + $0xb0] sm:$0xff]
    %v333 = vld [vmem:[%s5 + $0xb8] sm:$0xff]
    %v334 = vld [vmem:[%s5 + $0xc0] sm:$0xff]
    %v335 = vld [vmem:[%s5 + $0xc8] sm:$0xff]
    %v336 = vld [vmem:[%s5 + $0xd0] sm:$0xff]
    %v337 = vld [vmem:[%s5 + $0xd8] sm:$0xff]
    %v338 = vld [vmem:[%s5 + $0xe0] sm:$0xff]
    %v339 = vld [vmem:[%s5 + $0xe8] sm:$0xff]
    %v340 = vld [vmem:[%s5 + $0xf0] sm:$0xff]
    %v341 = vld [vmem:[%s5 + $0xf8] sm:$0xff]
    %v342 = vld [vmem:[%s5 + $0x100] sm:$0xff]
    %v343 = vld [vmem:[%s5 + $0x108] sm:$0xff]
    %v344 = vld [vmem:[%s5 + $0x110] sm:$0xff]
    %v345 = vld [vmem:[%s5 + $0x118] sm:$0xff]
    %v346 = vld [vmem:[%s5 + $0x120] sm:$0xff]
    %v347 = vld [vmem:[%s5 + $0x128] sm:$0xff]
    %v348 = vld [vmem:[%s5 + $0x130] sm:$0xff]
    %v349 = vld [vmem:[%s5 + $0x138] sm:$0xff]
    %v350 = vld [vmem:[%s5 + $0x140] sm:$0xff]
    %v351 = vld [vmem:[%s5 + $0x148] sm:$0xff]
    %v352 = vld [vmem:[%s5 + $0x150] sm:$0xff]
    %v353 = vld [vmem:[%s5 + $0x158] sm:$0xff]
    %v354 = vld [vmem:[%s5 + $0x160] sm:$0xff]
    %v355 = vld [vmem:[%s5 + $0x168] sm:$0xff]
    %v356 = vld [vmem:[%s5 + $0x170] sm:$0xff]
    %v357 = vld [vmem:[%s5 + $0x178] sm:$0xff]
    %v358 = vld [vmem:[%s5 + $0x180] sm:$0xff]
    %v359 = vld [vmem:[%s5 + $0x188] sm:$0xff]
    %v360 = vld [vmem:[%s5 + $0x190] sm:$0xff]
    %v361 = vld [vmem:[%s5 + $0x198] sm:$0xff]
    %v362 = vld [vmem:[%s5 + $0x1a0] sm:$0xff]
    %v363 = vld [vmem:[%s5 + $0x1a8] sm:$0xff]
    %v364 = vld [vmem:[%s5 + $0x1b0] sm:$0xff]
    %v365 = vld [vmem:[%s5 + $0x1b8] sm:$0xff]
    %v366 = vld [vmem:[%s5 + $0x1c0] sm:$0xff]
    %v367 = vld [vmem:[%s5 + $0x1c8] sm:$0xff]
    %v368 = vld [vmem:[%s5 + $0x1d0] sm:$0xff]
    %v369 = vld [vmem:[%s5 + $0x1d8] sm:$0xff]
    %v370 = vld [vmem:[%s5 + $0x1e0] sm:$0xff]
    %v371 = vld [vmem:[%s5 + $0x1e8] sm:$0xff]
    %v372 = vld [vmem:[%s5 + $0x1f0] sm:$0xff]
    %v373 = vld [vmem:[%s5 + $0x1f8] sm:$0xff]
    %v374 = vld [vmem:[%s5 + $0x200] sm:$0xff]
    %v375 = vld [vmem:[%s5 + $0x208] sm:$0xff]
    %v376 = vld [vmem:[%s5 + $0x210] sm:$0xff]
    %v377 = vld [vmem:[%s5 + $0x218] sm:$0xff]
    %v378 = vld [vmem:[%s5 + $0x220] sm:$0xff]
    %v379 = vld [vmem:[%s5 + $0x228] sm:$0xff]
    %v380 = vld [vmem:[%s5 + $0x230] sm:$0xff]
    %v381 = vld [vmem:[%s5 + $0x238] sm:$0xff]
    %v382 = vld [vmem:[%s5 + $0x240] sm:$0xff]
    %v383 = vld [vmem:[%s5 + $0x248] sm:$0xff]
    %v384 = vld [vmem:[%s5 + $0x250] sm:$0xff]
    %v385 = vld [vmem:[%s5 + $0x258] sm:$0xff]
    %v386 = vld [vmem:[%s5 + $0x260] sm:$0xff]
    %v387 = vld [vmem:[%s5 + $0x268] sm:$0xff]
    %v388 = vld [vmem:[%s5 + $0x270] sm:$0xff]
    %v389 = vld [vmem:[%s5 + $0x278] sm:$0xff]
    %v390 = vld [vmem:[%s5 + $0x280] sm:$0xff]
    %v391 = vld [vmem:[%s5 + $0x288] sm:$0xff]
    %v392 = vld [vmem:[%s5 + $0x290] sm:$0xff]
    %v393 = vld [vmem:[%s5 + $0x298] sm:$0xff]
    %v394 = vld [vmem:[%s5 + $0x2a0] sm:$0xff]
    %v395 = vld [vmem:[%s5 + $0x2a8] sm:$0xff]
    %v396 = vld [vmem:[%s5 + $0x2b0] sm:$0xff]
    %v397 = vld [vmem:[%s5 + $0x2b8] sm:$0xff]
    %v398 = vld [vmem:[%s5 + $0x2c0] sm:$0xff]
    %v399 = vld [vmem:[%s5 + $0x2c8] sm:$0xff]
    %v400 = vld [vmem:[%s5 + $0x2d0] sm:$0xff]
    %v401 = vld [vmem:[%s5 + $0x2d8] sm:$0xff]
    %v402 = vld [vmem:[%s5 + $0x2e0] sm:$0xff]
    %v403 = vld [vmem:[%s5 + $0x2e8] sm:$0xff]
    %v404 = vld [vmem:[%s5 + $0x2f0] sm:$0xff]
    %v405 = vld [vmem:[%s5 + $0x2f8] sm:$0xff]
    %v406 = vld [vmem:[%s5 + $0x300] sm:$0xff]
    %v407 = vld [vmem:[%s5 + $0x308] sm:$0xff]
    %v408 = vld [vmem:[%s5 + $0x310] sm:$0xff]
    %v409 = vld [vmem:[%s5 + $0x318] sm:$0xff]
    %v410 = vld [vmem:[%s5 + $0x320] sm:$0xff]
    %v411 = vld [vmem:[%s5 + $0x328] sm:$0xff]
    %v412 = vld [vmem:[%s5 + $0x330] sm:$0xff]
    %v413 = vld [vmem:[%s5 + $0x338] sm:$0xff]
    %v414 = vld [vmem:[%s5 + $0x340] sm:$0xff]
    %v415 = vld [vmem:[%s5 + $0x348] sm:$0xff]
    %v416 = vld [vmem:[%s5 + $0x350] sm:$0xff]
    %v417 = vld [vmem:[%s5 + $0x358] sm:$0xff]
    %v418 = vld [vmem:[%s5 + $0x360] sm:$0xff]
    %v419 = vld [vmem:[%s5 + $0x368] sm:$0xff]
    %v420 = vld [vmem:[%s5 + $0x370] sm:$0xff]
    %v421 = vld [vmem:[%s5 + $0x378] sm:$0xff]
    %v422 = vld [vmem:[%s5 + $0x380] sm:$0xff]
    %v423 = vld [vmem:[%s5 + $0x388] sm:$0xff]
    %v424 = vld [vmem:[%s5 + $0x390] sm:$0xff]
    %v425 = vld [vmem:[%s5 + $0x398] sm:$0xff]
    %v426 = vld [vmem:[%s5 + $0x3a0] sm:$0xff]
    %v427 = vld [vmem:[%s5 + $0x3a8] sm:$0xff]
    %v428 = vld [vmem:[%s5 + $0x3b0] sm:$0xff]
    %v429 = vld [vmem:[%s5 + $0x3b8] sm:$0xff]
    %v430 = vld [vmem:[%s5 + $0x3c0] sm:$0xff]
    %v431 = vld [vmem:[%s5 + $0x3c8] sm:$0xff]
    %v432 = vld [vmem:[%s5 + $0x3d0] sm:$0xff]
    %v433 = vld [vmem:[%s5 + $0x3d8] sm:$0xff]
    %v434 = vld [vmem:[%s5 + $0x3e0] sm:$0xff]
    %v435 = vld [vmem:[%s5 + $0x3e8] sm:$0xff]
    %v436 = vld [vmem:[%s5 + $0x3f0] sm:$0xff]
    %v437 = vld [vmem:[%s5 + $0x3f8] sm:$0xff]
    %v438 = vld [vmem:[%s5 + $0x400] sm:$0xff]
    %v439 = vld [vmem:[%s5 + $0x408] sm:$0xff]
    %v440 = vld [vmem:[%s5 + $0x410] sm:$0xff]
    %v441 = vld [vmem:[%s5 + $0x418] sm:$0xff]
    %v442 = vld [vmem:[%s5 + $0x420] sm:$0xff]
    %v443 = vld [vmem:[%s5 + $0x428] sm:$0xff]
    %v444 = vld [vmem:[%s5 + $0x430] sm:$0xff]
    %v445 = vld [vmem:[%s5 + $0x438] sm:$0xff]
    %v446 = vld [vmem:[%s5 + $0x440] sm:$0xff]
    %v447 = vld [vmem:[%s5 + $0x448] sm:$0xff]
    %v448 = vld [vmem:[%s5 + $0x450] sm:$0xff]
    %v449 = vld [vmem:[%s5 + $0x458] sm:$0xff]
    %v450 = vld [vmem:[%s5 + $0x460] sm:$0xff]
    %v451 = vld [vmem:[%s5 + $0x468] sm:$0xff]
    %v452 = vld [vmem:[%s5 + $0x470] sm:$0xff]
    %v453 = vld [vmem:[%s5 + $0x478] sm:$0xff]
    %vm454 = vcmask 1041408
    %v455 = vsel %vm454, %v236, 0.0
    %v456 = vrot.slane %v455, 4
    %v457 = vadd.f32 %v455, %v456
    %v458 = vrot.slane %v457, 2
    %v459 = vadd.f32 %v457, %v458
    %v460 = vrot.slane %v459, 1
    %v461 = vadd.f32 %v459, %v460
    %v462 = vsel %vm454, %v238, 0.0
    %v463 = vrot.slane %v462, 4
    %v464 = vadd.f32 %v462, %v463
    %v465 = vrot.slane %v464, 2
    %v466 = vadd.f32 %v464, %v465
    %v467 = vrot.slane %v466, 1
    %v468 = vadd.f32 %v466, %v467
    %v469 = vsel %vm454, %v307, 0.0
    %v470 = vrot.slane %v469, 4
    %v471 = vadd.f32 %v469, %v470
    %v472 = vrot.slane %v471, 2
    %v473 = vadd.f32 %v471, %v472
    %v474 = vrot.slane %v473, 1
    %v475 = vadd.f32 %v473, %v474
    %476 = vmatprep.subr.mxu0 %v311
    %477 = vmatpush1.msra.mxu0 %v310
    %478 = vmatprep.subr.mxu0 %v314
    %479 = vmatpush1.msra.mxu0 %v313
    %480 = vmatprep.subr.mxu0 %v317
    %481 = vmatpush1.msra.mxu0 %v316
    %482 = vmatprep.subr.mxu0 %v320
    %483 = vmatpush1.msra.mxu0 %v319
    %484 = vmatprep.subr.mxu0 %v323
    %485 = vmatpush1.msra.mxu0 %v322
    %486 = vmatprep.subr.mxu0 %v326
    %487 = vmatpush1.msra.mxu0 %v325
    %488 = vmatprep.subr.mxu0 %v329
    %489 = vmatpush1.msra.mxu0 %v328
    %490 = vmatprep.subr.mxu0 %v332
    %491 = vmatpush1.msra.mxu0 %v331
    %492 = vmatprep.subr.mxu0 %v335
    %493 = vmatpush1.msra.mxu0 %v334
    %494 = vmatprep.subr.mxu0 %v338
    %495 = vmatpush1.msra.mxu0 %v337
    %496 = vmatprep.subr.mxu0 %v341
    %497 = vmatpush1.msra.mxu0 %v340
    %498 = vmatprep.subr.mxu0 %v344
    %499 = vmatpush1.msra.mxu0 %v343
    %500 = vmatprep.subr.mxu0 %v347
    %501 = vmatpush1.msra.mxu0 %v346
    %502 = vmatprep.subr.mxu0 %v350
    %503 = vmatpush1.msra.mxu0 %v349
    %504 = vmatprep.subr.mxu0 %v353
    %505 = vmatpush1.msra.mxu0 %v352
    %506 = vmatprep.subr.mxu0 %v356
    %507 = vmatpush1.msra.mxu0 %v355
    %508 = vmatprep.subr.mxu0 %v359
    %509 = vmatpush1.msra.mxu0 %v358
    %510 = vmatprep.subr.mxu0 %v362
    %511 = vmatpush1.msra.mxu0 %v361
    %512 = vmatprep.subr.mxu0 %v365
    %513 = vmatpush1.msra.mxu0 %v364
    %514 = vmatprep.subr.mxu0 %v368
    %515 = vmatpush1.msra.mxu0 %v367
    %516 = vmatprep.subr.mxu0 %v371
    %517 = vmatpush1.msra.mxu0 %v370
    %518 = vmatprep.subr.mxu0 %v374
    %519 = vmatpush1.msra.mxu0 %v373
    %520 = vmatprep.subr.mxu0 %v377
    %521 = vmatpush1.msra.mxu0 %v376
    %522 = vmatprep.subr.mxu0 %v380
    %523 = vmatpush1.msra.mxu0 %v379
    %524 = vmatprep.subr.mxu0 %v383
    %525 = vmatpush1.msra.mxu0 %v382
    %526 = vmatprep.subr.mxu0 %v386
    %527 = vmatpush1.msra.mxu0 %v385
    %528 = vmatprep.subr.mxu0 %v389
    %529 = vmatpush1.msra.mxu0 %v388
    %530 = vmatprep.subr.mxu0 %v392
    %531 = vmatpush1.msra.mxu0 %v391
    %532 = vmatprep.subr.mxu0 %v395
    %533 = vmatpush1.msra.mxu0 %v394
    %534 = vmatprep.subr.mxu0 %v398
    %535 = vmatpush1.msra.mxu0 %v397
    %536 = vmatprep.subr.mxu0 %v401
    %537 = vmatpush1.msra.mxu0 %v400
    %538 = vmatprep.subr.mxu0 %v404
    %539 = vmatpush1.msra.mxu0 %v403
    %540 = vmatprep.mubr.f32.mxu0 %v468
    %541 = vmatmul.mubr.f32.gmra.mrb[0].mxu0 %v461
    %v542 = vpop.f32.mrb[0].mxu0
    %v543 = vadd.f32 0.0, %v542
    %v544 = vpop.f32.mrb[0].mxu0
    %v545 = vadd.f32 0.0, %v544
    %546 = vdwg.mxu0
    %547 = vmatprep.subr.mxu0 %v407
    %548 = vmatpush1.msra.mxu0 %v406
    %549 = vmatprep.subr.mxu0 %v410
    %550 = vmatpush1.msra.mxu0 %v409
    %551 = vmatprep.subr.mxu0 %v413
    %552 = vmatpush1.msra.mxu0 %v412
    %553 = vmatprep.subr.mxu0 %v416
    %554 = vmatpush1.msra.mxu0 %v415
    %555 = vmatprep.subr.mxu0 %v419
    %556 = vmatpush1.msra.mxu0 %v418
    %557 = vmatprep.subr.mxu0 %v422
    %558 = vmatpush1.msra.mxu0 %v421
    %559 = vmatprep.subr.mxu0 %v425
    %560 = vmatpush1.msra.mxu0 %v424
    %561 = vmatprep.subr.mxu0 %v428
    %562 = vmatpush1.msra.mxu0 %v427
    %563 = vmatprep.subr.mxu0 %v431
    %564 = vmatpush1.msra.mxu0 %v430
    %565 = vmatprep.subr.mxu0 %v434
    %566 = vmatpush1.msra.mxu0 %v433
    %567 = vmatprep.subr.mxu0 %v437
    %568 = vmatpush1.msra.mxu0 %v436
    %569 = vmatprep.subr.mxu0 %v440
    %570 = vmatpush1.msra.mxu0 %v439
    %571 = vmatprep.subr.mxu0 %v443
    %572 = vmatpush1.msra.mxu0 %v442
    %573 = vmatprep.subr.mxu0 %v446
    %574 = vmatpush1.msra.mxu0 %v445
    %575 = vmatprep.subr.mxu0 %v449
    %576 = vmatpush1.msra.mxu0 %v448
    %577 = vmatprep.subr.mxu0 %v452
    %578 = vmatpush1.msra.mxu0 %v451
    %579 = vmatprep.subr.mxu0 0.0
    %580 = vmatpush1.msra.mxu0 0.0
    %581 = vmatprep.subr.mxu0 0.0
    %582 = vmatpush1.msra.mxu0 0.0
    %583 = vmatprep.subr.mxu0 0.0
    %584 = vmatpush1.msra.mxu0 0.0
    %585 = vmatprep.subr.mxu0 0.0
    %586 = vmatpush1.msra.mxu0 0.0
    %587 = vmatprep.subr.mxu0 0.0
    %588 = vmatpush1.msra.mxu0 0.0
    %589 = vmatprep.subr.mxu0 0.0
    %590 = vmatpush1.msra.mxu0 0.0
    %591 = vmatprep.subr.mxu0 0.0
    %592 = vmatpush1.msra.mxu0 0.0
    %593 = vmatprep.subr.mxu0 0.0
    %594 = vmatpush1.msra.mxu0 0.0
    %595 = vmatprep.subr.mxu0 0.0
    %596 = vmatpush1.msra.mxu0 0.0
    %597 = vmatprep.subr.mxu0 0.0
    %598 = vmatpush1.msra.mxu0 0.0
    %599 = vmatprep.subr.mxu0 0.0
    %600 = vmatpush1.msra.mxu0 0.0
    %601 = vmatprep.subr.mxu0 0.0
    %602 = vmatpush1.msra.mxu0 0.0
    %603 = vmatprep.subr.mxu0 0.0
    %604 = vmatpush1.msra.mxu0 0.0
    %605 = vmatprep.subr.mxu0 0.0
    %606 = vmatpush1.msra.mxu0 0.0
    %607 = vmatprep.subr.mxu0 0.0
    %608 = vmatpush1.msra.mxu0 0.0
    %609 = vmatprep.subr.mxu0 0.0
    %610 = vmatpush1.msra.mxu0 0.0
    %611 = vmatprep.mubr.f32.mxu0 0.0
    %612 = vmatmul.mubr.f32.gmra.mrb[0].mxu0 %v475
    %v613 = vpop.f32.mrb[0].mxu0
    %v614 = vadd.f32 %v543, %v613
    %v615 = vpop.f32.mrb[0].mxu0
    %v616 = vadd.f32 %v545, %v615
    %617 = vdwg.mxu0
    %618 = vmatprep.subr.mxu0 0.0
    %619 = vmatpush1.msra.mxu0 %v312
    %620 = vmatprep.subr.mxu0 0.0
    %621 = vmatpush1.msra.mxu0 %v315
    %622 = vmatprep.subr.mxu0 0.0
    %623 = vmatpush1.msra.mxu0 %v318
    %624 = vmatprep.subr.mxu0 0.0
    %625 = vmatpush1.msra.mxu0 %v321
    %626 = vmatprep.subr.mxu0 0.0
    %627 = vmatpush1.msra.mxu0 %v324
    %628 = vmatprep.subr.mxu0 0.0
    %629 = vmatpush1.msra.mxu0 %v327
    %630 = vmatprep.subr.mxu0 0.0
    %631 = vmatpush1.msra.mxu0 %v330
    %632 = vmatprep.subr.mxu0 0.0
    %633 = vmatpush1.msra.mxu0 %v333
    %634 = vmatprep.subr.mxu0 0.0
    %635 = vmatpush1.msra.mxu0 %v336
    %636 = vmatprep.subr.mxu0 0.0
    %637 = vmatpush1.msra.mxu0 %v339
    %638 = vmatprep.subr.mxu0 0.0
    %639 = vmatpush1.msra.mxu0 %v342
    %640 = vmatprep.subr.mxu0 0.0
    %641 = vmatpush1.msra.mxu0 %v345
    %642 = vmatprep.subr.mxu0 0.0
    %643 = vmatpush1.msra.mxu0 %v348
    %644 = vmatprep.subr.mxu0 0.0
    %645 = vmatpush1.msra.mxu0 %v351
    %646 = vmatprep.subr.mxu0 0.0
    %647 = vmatpush1.msra.mxu0 %v354
    %648 = vmatprep.subr.mxu0 0.0
    %649 = vmatpush1.msra.mxu0 %v357
    %650 = vmatprep.subr.mxu0 0.0
    %651 = vmatpush1.msra.mxu0 %v360
    %652 = vmatprep.subr.mxu0 0.0
    %653 = vmatpush1.msra.mxu0 %v363
    %654 = vmatprep.subr.mxu0 0.0
    %655 = vmatpush1.msra.mxu0 %v366
    %656 = vmatprep.subr.mxu0 0.0
    %657 = vmatpush1.msra.mxu0 %v369
    %658 = vmatprep.subr.mxu0 0.0
    %659 = vmatpush1.msra.mxu0 %v372
    %660 = vmatprep.subr.mxu0 0.0
    %661 = vmatpush1.msra.mxu0 %v375
    %662 = vmatprep.subr.mxu0 0.0
    %663 = vmatpush1.msra.mxu0 %v378
    %664 = vmatprep.subr.mxu0 0.0
    %665 = vmatpush1.msra.mxu0 %v381
    %666 = vmatprep.subr.mxu0 0.0
    %667 = vmatpush1.msra.mxu0 %v384
    %668 = vmatprep.subr.mxu0 0.0
    %669 = vmatpush1.msra.mxu0 %v387
    %670 = vmatprep.subr.mxu0 0.0
    %671 = vmatpush1.msra.mxu0 %v390
    %672 = vmatprep.subr.mxu0 0.0
    %673 = vmatpush1.msra.mxu0 %v393
    %674 = vmatprep.subr.mxu0 0.0
    %675 = vmatpush1.msra.mxu0 %v396
    %676 = vmatprep.subr.mxu0 0.0
    %677 = vmatpush1.msra.mxu0 %v399
    %678 = vmatprep.subr.mxu0 0.0
    %679 = vmatpush1.msra.mxu0 %v402
    %680 = vmatprep.subr.mxu0 0.0
    %681 = vmatpush1.msra.mxu0 %v405
    %682 = vmatprep.mubr.f32.mxu0 %v468
    %683 = vmatmul.mubr.f32.gmra.mrb[0].mxu0 %v461
    %v684 = vpop.f32.mrb[0].mxu0
    %v685 = vadd.f32 0.0, %v684
    %v686 = vpop.f32.mrb[0].mxu0
    %687 = vdwg.mxu0
    %688 = vmatprep.subr.mxu0 0.0
    %689 = vmatpush1.msra.mxu0 %v408
    %690 = vmatprep.subr.mxu0 0.0
    %691 = vmatpush1.msra.mxu0 %v411
    %692 = vmatprep.subr.mxu0 0.0
    %693 = vmatpush1.msra.mxu0 %v414
    %694 = vmatprep.subr.mxu0 0.0
    %695 = vmatpush1.msra.mxu0 %v417
    %696 = vmatprep.subr.mxu0 0.0
    %697 = vmatpush1.msra.mxu0 %v420
    %698 = vmatprep.subr.mxu0 0.0
    %699 = vmatpush1.msra.mxu0 %v423
    %700 = vmatprep.subr.mxu0 0.0
    %701 = vmatpush1.msra.mxu0 %v426
    %702 = vmatprep.subr.mxu0 0.0
    %703 = vmatpush1.msra.mxu0 %v429
    %704 = vmatprep.subr.mxu0 0.0
    %705 = vmatpush1.msra.mxu0 %v432
    %706 = vmatprep.subr.mxu0 0.0
    %707 = vmatpush1.msra.mxu0 %v435
    %708 = vmatprep.subr.mxu0 0.0
    %709 = vmatpush1.msra.mxu0 %v438
    %710 = vmatprep.subr.mxu0 0.0
    %711 = vmatpush1.msra.mxu0 %v441
    %712 = vmatprep.subr.mxu0 0.0
    %713 = vmatpush1.msra.mxu0 %v444
    %714 = vmatprep.subr.mxu0 0.0
    %715 = vmatpush1.msra.mxu0 %v447
    %716 = vmatprep.subr.mxu0 0.0
    %717 = vmatpush1.msra.mxu0 %v450
    %718 = vmatprep.subr.mxu0 0.0
    %719 = vmatpush1.msra.mxu0 %v453
    %720 = vmatprep.subr.mxu0 0.0
    %721 = vmatpush1.msra.mxu0 0.0
    %722 = vmatprep.subr.mxu0 0.0
    %723 = vmatpush1.msra.mxu0 0.0
    %724 = vmatprep.subr.mxu0 0.0
    %725 = vmatpush1.msra.mxu0 0.0
    %726 = vmatprep.subr.mxu0 0.0
    %727 = vmatpush1.msra.mxu0 0.0
    %728 = vmatprep.subr.mxu0 0.0
    %729 = vmatpush1.msra.mxu0 0.0
    %730 = vmatprep.subr.mxu0 0.0
    %731 = vmatpush1.msra.mxu0 0.0
    %732 = vmatprep.subr.mxu0 0.0
    %733 = vmatpush1.msra.mxu0 0.0
    %734 = vmatprep.subr.mxu0 0.0
    %735 = vmatpush1.msra.mxu0 0.0
    %736 = vmatprep.subr.mxu0 0.0
    %737 = vmatpush1.msra.mxu0 0.0
    %738 = vmatprep.subr.mxu0 0.0
    %739 = vmatpush1.msra.mxu0 0.0
    %740 = vmatprep.subr.mxu0 0.0
    %741 = vmatpush1.msra.mxu0 0.0
    %742 = vmatprep.subr.mxu0 0.0
    %743 = vmatpush1.msra.mxu0 0.0
    %744 = vmatprep.subr.mxu0 0.0
    %745 = vmatpush1.msra.mxu0 0.0
    %746 = vmatprep.subr.mxu0 0.0
    %747 = vmatpush1.msra.mxu0 0.0
    %748 = vmatprep.subr.mxu0 0.0
    %749 = vmatpush1.msra.mxu0 0.0
    %750 = vmatprep.subr.mxu0 0.0
    %751 = vmatpush1.msra.mxu0 0.0
    %752 = vmatprep.mubr.f32.mxu0 0.0
    %753 = vmatmul.mubr.f32.gmra.mrb[0].mxu0 %v475
    %v754 = vpop.f32.mrb[0].mxu0
    %v755 = vadd.f32 %v685, %v754
    %v756 = vpop.f32.mrb[0].mxu0
    %757 = vdwg.mxu0
    %v758 = vmul.f32 %v614, 0.013888889
    %v759 = vmul.f32 %v616, 0.013888889
    %v760 = vmul.f32 %v755, 0.013888889
    %v761 = vlaneseq
    %v762 = vshrl.u32 %v761, 7
    %v763 = vsub.s32 0, %v762
    %v764 = vrot.slane %v758, %v763
    %v765 = vlaneseq
    %v766 = vshrl.u32 %v765, 7
    %v767 = vsub.s32 0, %v766
    %v768 = vrot.slane %v759, %v767
    %v769 = vlaneseq
    %v770 = vshrl.u32 %v769, 7
    %v771 = vsub.s32 0, %v770
    %v772 = vrot.slane %v760, %v771
    %v773 = vsub.f32 %v236, %v764
    %v774 = vsub.f32 %v238, %v768
    %v775 = vsub.f32 %v307, %v772
    %v776 = vmul.f32 %v773, %v773
    %v777 = vmul.f32 %v774, %v774
    %v778 = vmul.f32 %v775, %v775
    %v779 = vsel %vm454, %v776, 0.0
    %v780 = vrot.slane %v779, 4
    %v781 = vadd.f32 %v779, %v780
    %v782 = vrot.slane %v781, 2
    %v783 = vadd.f32 %v781, %v782
    %v784 = vrot.slane %v783, 1
    %v785 = vadd.f32 %v783, %v784
    %v786 = vsel %vm454, %v777, 0.0
    %v787 = vrot.slane %v786, 4
    %v788 = vadd.f32 %v786, %v787
    %v789 = vrot.slane %v788, 2
    %v790 = vadd.f32 %v788, %v789
    %v791 = vrot.slane %v790, 1
    %v792 = vadd.f32 %v790, %v791
    %v793 = vsel %vm454, %v778, 0.0
    %v794 = vrot.slane %v793, 4
    %v795 = vadd.f32 %v793, %v794
    %v796 = vrot.slane %v795, 2
    %v797 = vadd.f32 %v795, %v796
    %v798 = vrot.slane %v797, 1
    %v799 = vadd.f32 %v797, %v798
    %800 = vmatprep.subr.mxu0 %v311
    %801 = vmatpush1.msra.mxu0 %v310
    %802 = vmatprep.subr.mxu0 %v314
    %803 = vmatpush1.msra.mxu0 %v313
    %804 = vmatprep.subr.mxu0 %v317
    %805 = vmatpush1.msra.mxu0 %v316
    %806 = vmatprep.subr.mxu0 %v320
    %807 = vmatpush1.msra.mxu0 %v319
    %808 = vmatprep.subr.mxu0 %v323
    %809 = vmatpush1.msra.mxu0 %v322
    %810 = vmatprep.subr.mxu0 %v326
    %811 = vmatpush1.msra.mxu0 %v325
    %812 = vmatprep.subr.mxu0 %v329
    %813 = vmatpush1.msra.mxu0 %v328
    %814 = vmatprep.subr.mxu0 %v332
    %815 = vmatpush1.msra.mxu0 %v331
    %816 = vmatprep.subr.mxu0 %v335
    %817 = vmatpush1.msra.mxu0 %v334
    %818 = vmatprep.subr.mxu0 %v338
    %819 = vmatpush1.msra.mxu0 %v337
    %820 = vmatprep.subr.mxu0 %v341
    %821 = vmatpush1.msra.mxu0 %v340
    %822 = vmatprep.subr.mxu0 %v344
    %823 = vmatpush1.msra.mxu0 %v343
    %824 = vmatprep.subr.mxu0 %v347
    %825 = vmatpush1.msra.mxu0 %v346
    %826 = vmatprep.subr.mxu0 %v350
    %827 = vmatpush1.msra.mxu0 %v349
    %828 = vmatprep.subr.mxu0 %v353
    %829 = vmatpush1.msra.mxu0 %v352
    %830 = vmatprep.subr.mxu0 %v356
    %831 = vmatpush1.msra.mxu0 %v355
    %832 = vmatprep.subr.mxu0 %v359
    %833 = vmatpush1.msra.mxu0 %v358
    %834 = vmatprep.subr.mxu0 %v362
    %835 = vmatpush1.msra.mxu0 %v361
    %836 = vmatprep.subr.mxu0 %v365
    %837 = vmatpush1.msra.mxu0 %v364
    %838 = vmatprep.subr.mxu0 %v368
    %839 = vmatpush1.msra.mxu0 %v367
    %840 = vmatprep.subr.mxu0 %v371
    %841 = vmatpush1.msra.mxu0 %v370
    %842 = vmatprep.subr.mxu0 %v374
    %843 = vmatpush1.msra.mxu0 %v373
    %844 = vmatprep.subr.mxu0 %v377
    %845 = vmatpush1.msra.mxu0 %v376
    %846 = vmatprep.subr.mxu0 %v380
    %847 = vmatpush1.msra.mxu0 %v379
    %848 = vmatprep.subr.mxu0 %v383
    %849 = vmatpush1.msra.mxu0 %v382
    %850 = vmatprep.subr.mxu0 %v386
    %851 = vmatpush1.msra.mxu0 %v385
    %852 = vmatprep.subr.mxu0 %v389
    %853 = vmatpush1.msra.mxu0 %v388
    %854 = vmatprep.subr.mxu0 %v392
    %855 = vmatpush1.msra.mxu0 %v391
    %856 = vmatprep.subr.mxu0 %v395
    %857 = vmatpush1.msra.mxu0 %v394
    %858 = vmatprep.subr.mxu0 %v398
    %859 = vmatpush1.msra.mxu0 %v397
    %860 = vmatprep.subr.mxu0 %v401
    %861 = vmatpush1.msra.mxu0 %v400
    %862 = vmatprep.subr.mxu0 %v404
    %863 = vmatpush1.msra.mxu0 %v403
    %864 = vmatprep.mubr.f32.mxu0 %v792
    %865 = vmatmul.mubr.f32.gmra.mrb[0].mxu0 %v785
    %v866 = vpop.f32.mrb[0].mxu0
    %v867 = vadd.f32 0.0, %v866
    %v868 = vpop.f32.mrb[0].mxu0
    %v869 = vadd.f32 0.0, %v868
    %870 = vdwg.mxu0
    %871 = vmatprep.subr.mxu0 %v407
    %872 = vmatpush1.msra.mxu0 %v406
    %873 = vmatprep.subr.mxu0 %v410
    %874 = vmatpush1.msra.mxu0 %v409
    %875 = vmatprep.subr.mxu0 %v413
    %876 = vmatpush1.msra.mxu0 %v412
    %877 = vmatprep.subr.mxu0 %v416
    %878 = vmatpush1.msra.mxu0 %v415
    %879 = vmatprep.subr.mxu0 %v419
    %880 = vmatpush1.msra.mxu0 %v418
    %881 = vmatprep.subr.mxu0 %v422
    %882 = vmatpush1.msra.mxu0 %v421
    %883 = vmatprep.subr.mxu0 %v425
    %884 = vmatpush1.msra.mxu0 %v424
    %885 = vmatprep.subr.mxu0 %v428
    %886 = vmatpush1.msra.mxu0 %v427
    %887 = vmatprep.subr.mxu0 %v431
    %888 = vmatpush1.msra.mxu0 %v430
    %889 = vmatprep.subr.mxu0 %v434
    %890 = vmatpush1.msra.mxu0 %v433
    %891 = vmatprep.subr.mxu0 %v437
    %892 = vmatpush1.msra.mxu0 %v436
    %893 = vmatprep.subr.mxu0 %v440
    %894 = vmatpush1.msra.mxu0 %v439
    %895 = vmatprep.subr.mxu0 %v443
    %896 = vmatpush1.msra.mxu0 %v442
    %897 = vmatprep.subr.mxu0 %v446
    %898 = vmatpush1.msra.mxu0 %v445
    %899 = vmatprep.subr.mxu0 %v449
    %900 = vmatpush1.msra.mxu0 %v448
    %901 = vmatprep.subr.mxu0 %v452
    %902 = vmatpush1.msra.mxu0 %v451
    %903 = vmatprep.subr.mxu0 0.0
    %904 = vmatpush1.msra.mxu0 0.0
    %905 = vmatprep.subr.mxu0 0.0
    %906 = vmatpush1.msra.mxu0 0.0
    %907 = vmatprep.subr.mxu0 0.0
    %908 = vmatpush1.msra.mxu0 0.0
    %909 = vmatprep.subr.mxu0 0.0
    %910 = vmatpush1.msra.mxu0 0.0
    %911 = vmatprep.subr.mxu0 0.0
    %912 = vmatpush1.msra.mxu0 0.0
    %913 = vmatprep.subr.mxu0 0.0
    %914 = vmatpush1.msra.mxu0 0.0
    %915 = vmatprep.subr.mxu0 0.0
    %916 = vmatpush1.msra.mxu0 0.0
    %917 = vmatprep.subr.mxu0 0.0
    %918 = vmatpush1.msra.mxu0 0.0
    %919 = vmatprep.subr.mxu0 0.0
    %920 = vmatpush1.msra.mxu0 0.0
    %921 = vmatprep.subr.mxu0 0.0
    %922 = vmatpush1.msra.mxu0 0.0
    %923 = vmatprep.subr.mxu0 0.0
    %924 = vmatpush1.msra.mxu0 0.0
    %925 = vmatprep.subr.mxu0 0.0
    %926 = vmatpush1.msra.mxu0 0.0
    %927 = vmatprep.subr.mxu0 0.0
    %928 = vmatpush1.msra.mxu0 0.0
    %929 = vmatprep.subr.mxu0 0.0
    %930 = vmatpush1.msra.mxu0 0.0
    %931 = vmatprep.subr.mxu0 0.0
    %932 = vmatpush1.msra.mxu0 0.0
    %933 = vmatprep.subr.mxu0 0.0
    %934 = vmatpush1.msra.mxu0 0.0
    %935 = vmatprep.mubr.f32.mxu0 0.0
    %936 = vmatmul.mubr.f32.gmra.mrb[0].mxu0 %v799
    %v937 = vpop.f32.mrb[0].mxu0
    %v938 = vadd.f32 %v867, %v937
    %v939 = vpop.f32.mrb[0].mxu0
    %v940 = vadd.f32 %v869, %v939
    %941 = vdwg.mxu0
    %942 = vmatprep.subr.mxu0 0.0
    %943 = vmatpush1.msra.mxu0 %v312
    %944 = vmatprep.subr.mxu0 0.0
    %945 = vmatpush1.msra.mxu0 %v315
    %946 = vmatprep.subr.mxu0 0.0
    %947 = vmatpush1.msra.mxu0 %v318
    %948 = vmatprep.subr.mxu0 0.0
    %949 = vmatpush1.msra.mxu0 %v321
    %950 = vmatprep.subr.mxu0 0.0
    %951 = vmatpush1.msra.mxu0 %v324
    %952 = vmatprep.subr.mxu0 0.0
    %953 = vmatpush1.msra.mxu0 %v327
    %954 = vmatprep.subr.mxu0 0.0
    %955 = vmatpush1.msra.mxu0 %v330
    %956 = vmatprep.subr.mxu0 0.0
    %957 = vmatpush1.msra.mxu0 %v333
    %958 = vmatprep.subr.mxu0 0.0
    %959 = vmatpush1.msra.mxu0 %v336
    %960 = vmatprep.subr.mxu0 0.0
    %961 = vmatpush1.msra.mxu0 %v339
    %962 = vmatprep.subr.mxu0 0.0
    %963 = vmatpush1.msra.mxu0 %v342
    %964 = vmatprep.subr.mxu0 0.0
    %965 = vmatpush1.msra.mxu0 %v345
    %966 = vmatprep.subr.mxu0 0.0
    %967 = vmatpush1.msra.mxu0 %v348
    %968 = vmatprep.subr.mxu0 0.0
    %969 = vmatpush1.msra.mxu0 %v351
    %970 = vmatprep.subr.mxu0 0.0
    %971 = vmatpush1.msra.mxu0 %v354
    %972 = vmatprep.subr.mxu0 0.0
    %973 = vmatpush1.msra.mxu0 %v357
    %974 = vmatprep.subr.mxu0 0.0
    %975 = vmatpush1.msra.mxu0 %v360
    %976 = vmatprep.subr.mxu0 0.0
    %977 = vmatpush1.msra.mxu0 %v363
    %978 = vmatprep.subr.mxu0 0.0
    %979 = vmatpush1.msra.mxu0 %v366
    %980 = vmatprep.subr.mxu0 0.0
    %981 = vmatpush1.msra.mxu0 %v369
    %982 = vmatprep.subr.mxu0 0.0
    %983 = vmatpush1.msra.mxu0 %v372
    %984 = vmatprep.subr.mxu0 0.0
    %985 = vmatpush1.msra.mxu0 %v375
    %986 = vmatprep.subr.mxu0 0.0
    %987 = vmatpush1.msra.mxu0 %v378
    %988 = vmatprep.subr.mxu0 0.0
    %989 = vmatpush1.msra.mxu0 %v381
    %990 = vmatprep.subr.mxu0 0.0
    %991 = vmatpush1.msra.mxu0 %v384
    %992 = vmatprep.subr.mxu0 0.0
    %993 = vmatpush1.msra.mxu0 %v387
    %994 = vmatprep.subr.mxu0 0.0
    %995 = vmatpush1.msra.mxu0 %v390
    %996 = vmatprep.subr.mxu0 0.0
    %997 = vmatpush1.msra.mxu0 %v393
    %998 = vmatprep.subr.mxu0 0.0
    %999 = vmatpush1.msra.mxu0 %v396
    %1000 = vmatprep.subr.mxu0 0.0
    %1001 = vmatpush1.msra.mxu0 %v399
    %1002 = vmatprep.subr.mxu0 0.0
    %1003 = vmatpush1.msra.mxu0 %v402
    %1004 = vmatprep.subr.mxu0 0.0
    %1005 = vmatpush1.msra.mxu0 %v405
    %1006 = vmatprep.mubr.f32.mxu0 %v792
    %1007 = vmatmul.mubr.f32.gmra.mrb[0].mxu0 %v785
    %v1008 = vpop.f32.mrb[0].mxu0
    %v1009 = vadd.f32 0.0, %v1008
    %v1010 = vpop.f32.mrb[0].mxu0
    %1011 = vdwg.mxu0
    %1012 = vmatprep.subr.mxu0 0.0
    %1013 = vmatpush1.msra.mxu0 %v408
    %1014 = vmatprep.subr.mxu0 0.0
    %1015 = vmatpush1.msra.mxu0 %v411
    %1016 = vmatprep.subr.mxu0 0.0
    %1017 = vmatpush1.msra.mxu0 %v414
    %1018 = vmatprep.subr.mxu0 0.0
    %1019 = vmatpush1.msra.mxu0 %v417
    %1020 = vmatprep.subr.mxu0 0.0
    %1021 = vmatpush1.msra.mxu0 %v420
    %1022 = vmatprep.subr.mxu0 0.0
    %1023 = vmatpush1.msra.mxu0 %v423
    %1024 = vmatprep.subr.mxu0 0.0
    %1025 = vmatpush1.msra.mxu0 %v426
    %1026 = vmatprep.subr.mxu0 0.0
    %1027 = vmatpush1.msra.mxu0 %v429
    %1028 = vmatprep.subr.mxu0 0.0
    %1029 = vmatpush1.msra.mxu0 %v432
    %1030 = vmatprep.subr.mxu0 0.0
    %1031 = vmatpush1.msra.mxu0 %v435
    %1032 = vmatprep.subr.mxu0 0.0
    %1033 = vmatpush1.msra.mxu0 %v438
    %1034 = vmatprep.subr.mxu0 0.0
    %1035 = vmatpush1.msra.mxu0 %v441
    %1036 = vmatprep.subr.mxu0 0.0
    %1037 = vmatpush1.msra.mxu0 %v444
    %1038 = vmatprep.subr.mxu0 0.0
    %1039 = vmatpush1.msra.mxu0 %v447
    %1040 = vmatprep.subr.mxu0 0.0
    %1041 = vmatpush1.msra.mxu0 %v450
    %1042 = vmatprep.subr.mxu0 0.0
    %1043 = vmatpush1.msra.mxu0 %v453
    %1044 = vmatprep.subr.mxu0 0.0
    %1045 = vmatpush1.msra.mxu0 0.0
    %1046 = vmatprep.subr.mxu0 0.0
    %1047 = vmatpush1.msra.mxu0 0.0
    %1048 = vmatprep.subr.mxu0 0.0
    %1049 = vmatpush1.msra.mxu0 0.0
    %1050 = vmatprep.subr.mxu0 0.0
    %1051 = vmatpush1.msra.mxu0 0.0
    %1052 = vmatprep.subr.mxu0 0.0
    %1053 = vmatpush1.msra.mxu0 0.0
    %1054 = vmatprep.subr.mxu0 0.0
    %1055 = vmatpush1.msra.mxu0 0.0
    %1056 = vmatprep.subr.mxu0 0.0
    %1057 = vmatpush1.msra.mxu0 0.0
    %1058 = vmatprep.subr.mxu0 0.0
    %1059 = vmatpush1.msra.mxu0 0.0
    %1060 = vmatprep.subr.mxu0 0.0
    %1061 = vmatpush1.msra.mxu0 0.0
    %1062 = vmatprep.subr.mxu0 0.0
    %1063 = vmatpush1.msra.mxu0 0.0
    %1064 = vmatprep.subr.mxu0 0.0
    %1065 = vmatpush1.msra.mxu0 0.0
    %1066 = vmatprep.subr.mxu0 0.0
    %1067 = vmatpush1.msra.mxu0 0.0
    %1068 = vmatprep.subr.mxu0 0.0
    %1069 = vmatpush1.msra.mxu0 0.0
    %1070 = vmatprep.subr.mxu0 0.0
    %1071 = vmatpush1.msra.mxu0 0.0
    %1072 = vmatprep.subr.mxu0 0.0
    %1073 = vmatpush1.msra.mxu0 0.0
    %1074 = vmatprep.subr.mxu0 0.0
    %1075 = vmatpush1.msra.mxu0 0.0
    %1076 = vmatprep.mubr.f32.mxu0 0.0
    %1077 = vmatmul.mubr.f32.gmra.mrb[0].mxu0 %v799
    %v1078 = vpop.f32.mrb[0].mxu0
    %v1079 = vadd.f32 %v1009, %v1078
    %v1080 = vpop.f32.mrb[0].mxu0
    %1081 = vdwg.mxu0
    %v1082 = vmul.f32 %v938, 0.013888889
    %v1083 = vmul.f32 %v940, 0.013888889
    %v1084 = vmul.f32 %v1079, 0.013888889
    %v1085 = vld [vmem:[%s6] sm:$0x7]
    %v1086 = vadd.f32 %v1082, 1e-05
    %v1087 = vadd.f32 %v1083, 1e-05
    %v1088 = vadd.f32 %v1084, 1e-05
    %v1089 = vrsqrt.pop %v1086
    %v1090 = vrsqrt.pop %v1087
    %v1091 = vrsqrt.pop %v1088
    %v1095 = vcombine.low %v1089, %v1090
    %v1097 = vunpack.c.l.s4 1966171168
    %v1098 = vunpack.c.0.s8 %v1097
    %v1099 = vlaneseq
    %v1100 = vshrl.u32 %v1099, 7
    %v1101 = vsub.s32 %v1098, %v1100
    %v1102 = vrot.slane %v1095, %v1101
    %v1104 = vunpack.c.l.s4 1966171168
    %v1105 = vunpack.c.0.s8 %v1104
    %v1106 = vlaneseq
    %v1107 = vshrl.u32 %v1106, 7
    %v1108 = vsub.s32 %v1105, %v1107
    %v1109 = vrot.slane %v1091, %v1108
    %v1110 = vcombine.low %v1102, %v1109
    %v1112 = vunpack.c.l.s4 1966171168
    %v1113 = vunpack.c.0.s8 %v1112
    %v1114 = vlaneseq
    %v1115 = vshrl.u32 %v1114, 7
    %v1116 = vsub.s32 %v1113, %v1115
    %v1117 = vrot.slane %v1110, %v1116
    %v1119 = vmul.f32 %v1085, %v1117
    %v1121 = vlaneseq
    %v1122 = vshrl.u32 %v1121, 7
    %v1123 = vsub.s32 0, %v1122
    %v1124 = vrot.slane %v1119, %v1123
    %v1125 = vlaneseq
    %v1126 = vshrl.u32 %v1125, 7
    %v1127 = vsub.s32 1, %v1126
    %v1128 = vrot.slane %v1119, %v1127
    %v1129 = vlaneseq
    %v1130 = vshrl.u32 %v1129, 7
    %v1131 = vsub.s32 2, %v1130
    %v1132 = vrot.slane %v1119, %v1131
    %v1136 = vmul.f32 %v773, %v1124
    %v1137 = vmul.f32 %v774, %v1128
    %v1138 = vmul.f32 %v775, %v1132
    %v1139 = vld [vmem:[%s7] sm:$0x7]
    %v1141 = vlaneseq
    %v1142 = vshrl.u32 %v1141, 7
    %v1143 = vsub.s32 0, %v1142
    %v1144 = vrot.slane %v1139, %v1143
    %v1145 = vlaneseq
    %v1146 = vshrl.u32 %v1145, 7
    %v1147 = vsub.s32 1, %v1146
    %v1148 = vrot.slane %v1139, %v1147
    %v1149 = vlaneseq
    %v1150 = vshrl.u32 %v1149, 7
    %v1151 = vsub.s32 2, %v1150
    %v1152 = vrot.slane %v1139, %v1151
    %v1156 = vadd.f32 %v1136, %v1144
    %v1157 = vadd.f32 %v1137, %v1148
    %v1158 = vadd.f32 %v1138, %v1152
    %v1159 = vmax.f32 %v1156, 0.0
    %v1160 = vmax.f32 %v1157, 0.0
    %v1161 = vmax.f32 %v1158, 0.0
    %v1162 = vld [vmem:[%s8] sm:$0xff]
    %v1163 = vld [vmem:[%s8 + $0x8] sm:$0xff]
    %v1164 = vld [vmem:[%s8 + $0x10] sm:$0xff]
    %v1165 = vld [vmem:[%s8 + $0x18] sm:$0xff]
    %v1166 = vld [vmem:[%s8 + $0x20] sm:$0xff]
    %v1167 = vld [vmem:[%s8 + $0x28] sm:$0xff]
    %v1168 = vld [vmem:[%s8 + $0x30] sm:$0xff]
    %v1169 = vld [vmem:[%s8 + $0x38] sm:$0xff]
    %v1170 = vld [vmem:[%s8 + $0x40] sm:$0xff]
    %v1171 = vld [vmem:[%s8 + $0x48] sm:$0xff]
    %v1172 = vld [vmem:[%s8 + $0x50] sm:$0xff]
    %v1173 = vld [vmem:[%s8 + $0x58] sm:$0xff]
    %v1174 = vld [vmem:[%s8 + $0x60] sm:$0xff]
    %v1175 = vld [vmem:[%s8 + $0x68] sm:$0xff]
    %v1176 = vld [vmem:[%s8 + $0x70] sm:$0xff]
    %v1177 = vld [vmem:[%s8 + $0x78] sm:$0xff]
    %v1178 = vld [vmem:[%s8 + $0x80] sm:$0xff]
    %v1179 = vld [vmem:[%s8 + $0x88] sm:$0xff]
    %v1180 = vld [vmem:[%s8 + $0x90] sm:$0xff]
    %v1181 = vld [vmem:[%s8 + $0x98] sm:$0xff]
    %v1182 = vld [vmem:[%s8 + $0xa0] sm:$0xff]
    %v1183 = vld [vmem:[%s8 + $0xa8] sm:$0xff]
    %v1184 = vld [vmem:[%s8 + $0xb0] sm:$0xff]
    %v1185 = vld [vmem:[%s8 + $0xb8] sm:$0xff]
    %v1186 = vld [vmem:[%s8 + $0xc0] sm:$0xff]
    %v1187 = vld [vmem:[%s8 + $0xc8] sm:$0xff]
    %v1188 = vld [vmem:[%s8 + $0xd0] sm:$0xff]
    %v1189 = vld [vmem:[%s8 + $0xd8] sm:$0xff]
    %v1190 = vld [vmem:[%s8 + $0xe0] sm:$0xff]
    %v1191 = vld [vmem:[%s8 + $0xe8] sm:$0xff]
    %v1192 = vld [vmem:[%s8 + $0xf0] sm:$0xff]
    %v1193 = vld [vmem:[%s8 + $0xf8] sm:$0xff]
    %v1194 = vld [vmem:[%s8 + $0x100] sm:$0xff]
    %v1195 = vld [vmem:[%s8 + $0x108] sm:$0xff]
    %v1196 = vld [vmem:[%s8 + $0x110] sm:$0xff]
    %v1197 = vld [vmem:[%s8 + $0x118] sm:$0xff]
    %v1198 = vld [vmem:[%s8 + $0x120] sm:$0xff]
    %v1199 = vld [vmem:[%s8 + $0x128] sm:$0xff]
    %v1200 = vld [vmem:[%s8 + $0x130] sm:$0xff]
    %v1201 = vld [vmem:[%s8 + $0x138] sm:$0xff]
    %v1202 = vld [vmem:[%s8 + $0x140] sm:$0xff]
    %v1203 = vld [vmem:[%s8 + $0x148] sm:$0xff]
    %v1204 = vld [vmem:[%s8 + $0x150] sm:$0xff]
    %v1205 = vld [vmem:[%s8 + $0x158] sm:$0xff]
    %v1206 = vld [vmem:[%s8 + $0x160] sm:$0xff]
    %v1207 = vld [vmem:[%s8 + $0x168] sm:$0xff]
    %v1208 = vld [vmem:[%s8 + $0x170] sm:$0xff]
    %v1209 = vld [vmem:[%s8 + $0x178] sm:$0xff]
    %1210 = vmatprep.subr.mxu0 0.0
    %1211 = vmatpush1.msra.mxu0 %v1162
    %1212 = vmatprep.subr.mxu0 0.0
    %1213 = vmatpush1.msra.mxu0 %v1163
    %1214 = vmatprep.subr.mxu0 0.0
    %1215 = vmatpush1.msra.mxu0 %v1164
    %1216 = vmatprep.subr.mxu0 0.0
    %1217 = vmatpush1.msra.mxu0 %v1165
    %1218 = vmatprep.subr.mxu0 0.0
    %1219 = vmatpush1.msra.mxu0 %v1166
    %1220 = vmatprep.subr.mxu0 0.0
    %1221 = vmatpush1.msra.mxu0 %v1167
    %1222 = vmatprep.subr.mxu0 0.0
    %1223 = vmatpush1.msra.mxu0 %v1168
    %1224 = vmatprep.subr.mxu0 0.0
    %1225 = vmatpush1.msra.mxu0 %v1169
    %1226 = vmatprep.subr.mxu0 0.0
    %1227 = vmatpush1.msra.mxu0 %v1170
    %1228 = vmatprep.subr.mxu0 0.0
    %1229 = vmatpush1.msra.mxu0 %v1171
    %1230 = vmatprep.subr.mxu0 0.0
    %1231 = vmatpush1.msra.mxu0 %v1172
    %1232 = vmatprep.subr.mxu0 0.0
    %1233 = vmatpush1.msra.mxu0 %v1173
    %1234 = vmatprep.subr.mxu0 0.0
    %1235 = vmatpush1.msra.mxu0 %v1174
    %1236 = vmatprep.subr.mxu0 0.0
    %1237 = vmatpush1.msra.mxu0 %v1175
    %1238 = vmatprep.subr.mxu0 0.0
    %1239 = vmatpush1.msra.mxu0 %v1176
    %1240 = vmatprep.subr.mxu0 0.0
    %1241 = vmatpush1.msra.mxu0 %v1177
    %1242 = vmatprep.subr.mxu0 0.0
    %1243 = vmatpush1.msra.mxu0 %v1178
    %1244 = vmatprep.subr.mxu0 0.0
    %1245 = vmatpush1.msra.mxu0 %v1179
    %1246 = vmatprep.subr.mxu0 0.0
    %1247 = vmatpush1.msra.mxu0 %v1180
    %1248 = vmatprep.subr.mxu0 0.0
    %1249 = vmatpush1.msra.mxu0 %v1181
    %1250 = vmatprep.subr.mxu0 0.0
    %1251 = vmatpush1.msra.mxu0 %v1182
    %1252 = vmatprep.subr.mxu0 0.0
    %1253 = vmatpush1.msra.mxu0 %v1183
    %1254 = vmatprep.subr.mxu0 0.0
    %1255 = vmatpush1.msra.mxu0 %v1184
    %1256 = vmatprep.subr.mxu0 0.0
    %1257 = vmatpush1.msra.mxu0 %v1185
    %1258 = vmatprep.subr.mxu0 0.0
    %1259 = vmatpush1.msra.mxu0 %v1186
    %1260 = vmatprep.subr.mxu0 0.0
    %1261 = vmatpush1.msra.mxu0 %v1187
    %1262 = vmatprep.subr.mxu0 0.0
    %1263 = vmatpush1.msra.mxu0 %v1188
    %1264 = vmatprep.subr.mxu0 0.0
    %1265 = vmatpush1.msra.mxu0 %v1189
    %1266 = vmatprep.subr.mxu0 0.0
    %1267 = vmatpush1.msra.mxu0 %v1190
    %1268 = vmatprep.subr.mxu0 0.0
    %1269 = vmatpush1.msra.mxu0 %v1191
    %1270 = vmatprep.subr.mxu0 0.0
    %1271 = vmatpush1.msra.mxu0 %v1192
    %1272 = vmatprep.subr.mxu0 0.0
    %1273 = vmatpush1.msra.mxu0 %v1193
    %1274 = vmatprep.mubr.f32.mxu0 %v1160
    %1275 = vmatmul.mubr.f32.gmra.mrb[0].mxu0 %v1159
    %v1276 = vpop.f32.mrb[0].mxu0
    %v1277 = vadd.f32 0.0, %v1276
    %v1278 = vpop.f32.mrb[0].mxu0
    %1279 = vdwg.mxu0
    %1280 = vmatprep.subr.mxu0 0.0
    %1281 = vmatpush1.msra.mxu0 %v1194
    %1282 = vmatprep.subr.mxu0 0.0
    %1283 = vmatpush1.msra.mxu0 %v1195
    %1284 = vmatprep.subr.mxu0 0.0
    %1285 = vmatpush1.msra.mxu0 %v1196
    %1286 = vmatprep.subr.mxu0 0.0
    %1287 = vmatpush1.msra.mxu0 %v1197
    %1288 = vmatprep.subr.mxu0 0.0
    %1289 = vmatpush1.msra.mxu0 %v1198
    %1290 = vmatprep.subr.mxu0 0.0
    %1291 = vmatpush1.msra.mxu0 %v1199
    %1292 = vmatprep.subr.mxu0 0.0
    %1293 = vmatpush1.msra.mxu0 %v1200
    %1294 = vmatprep.subr.mxu0 0.0
    %1295 = vmatpush1.msra.mxu0 %v1201
    %1296 = vmatprep.subr.mxu0 0.0
    %1297 = vmatpush1.msra.mxu0 %v1202
    %1298 = vmatprep.subr.mxu0 0.0
    %1299 = vmatpush1.msra.mxu0 %v1203
    %1300 = vmatprep.subr.mxu0 0.0
    %1301 = vmatpush1.msra.mxu0 %v1204
    %1302 = vmatprep.subr.mxu0 0.0
    %1303 = vmatpush1.msra.mxu0 %v1205
    %1304 = vmatprep.subr.mxu0 0.0
    %1305 = vmatpush1.msra.mxu0 %v1206
    %1306 = vmatprep.subr.mxu0 0.0
    %1307 = vmatpush1.msra.mxu0 %v1207
    %1308 = vmatprep.subr.mxu0 0.0
    %1309 = vmatpush1.msra.mxu0 %v1208
    %1310 = vmatprep.subr.mxu0 0.0
    %1311 = vmatpush1.msra.mxu0 %v1209
    %1312 = vmatprep.subr.mxu0 0.0
    %1313 = vmatpush1.msra.mxu0 0.0
    %1314 = vmatprep.subr.mxu0 0.0
    %1315 = vmatpush1.msra.mxu0 0.0
    %1316 = vmatprep.subr.mxu0 0.0
    %1317 = vmatpush1.msra.mxu0 0.0
    %1318 = vmatprep.subr.mxu0 0.0
    %1319 = vmatpush1.msra.mxu0 0.0
    %1320 = vmatprep.subr.mxu0 0.0
    %1321 = vmatpush1.msra.mxu0 0.0
    %1322 = vmatprep.subr.mxu0 0.0
    %1323 = vmatpush1.msra.mxu0 0.0
    %1324 = vmatprep.subr.mxu0 0.0
    %1325 = vmatpush1.msra.mxu0 0.0
    %1326 = vmatprep.subr.mxu0 0.0
    %1327 = vmatpush1.msra.mxu0 0.0
    %1328 = vmatprep.subr.mxu0 0.0
    %1329 = vmatpush1.msra.mxu0 0.0
    %1330 = vmatprep.subr.mxu0 0.0
    %1331 = vmatpush1.msra.mxu0 0.0
    %1332 = vmatprep.subr.mxu0 0.0
    %1333 = vmatpush1.msra.mxu0 0.0
    %1334 = vmatprep.subr.mxu0 0.0
    %1335 = vmatpush1.msra.mxu0 0.0
    %1336 = vmatprep.subr.mxu0 0.0
    %1337 = vmatpush1.msra.mxu0 0.0
    %1338 = vmatprep.subr.mxu0 0.0
    %1339 = vmatpush1.msra.mxu0 0.0
    %1340 = vmatprep.subr.mxu0 0.0
    %1341 = vmatpush1.msra.mxu0 0.0
    %1342 = vmatprep.subr.mxu0 0.0
    %1343 = vmatpush1.msra.mxu0 0.0
    %1344 = vmatprep.mubr.f32.mxu0 0.0
    %1345 = vmatmul.mubr.f32.gmra.mrb[0].mxu0 %v1161
    %v1346 = vpop.f32.mrb[0].mxu0
    %v1347 = vadd.f32 %v1277, %v1346
    %v1348 = vpop.f32.mrb[0].mxu0
    %1349 = vdwg.mxu0
    %v1350 = vld [vmem:[%s9] sm:$0xff]
    %v1351 = vld [vmem:[%s9 + $0x8] sm:$0xff]
    %v1352 = vld [vmem:[%s9 + $0x10] sm:$0xff]
    %v1353 = vld [vmem:[%s9 + $0x18] sm:$0xff]
    %v1354 = vld [vmem:[%s9 + $0x20] sm:$0xff]
    %v1355 = vld [vmem:[%s9 + $0x28] sm:$0xff]
    %v1356 = vld [vmem:[%s9 + $0x30] sm:$0xff]
    %v1357 = vld [vmem:[%s9 + $0x38] sm:$0xff]
    %v1358 = vld [vmem:[%s9 + $0x40] sm:$0xff]
    %v1359 = vld [vmem:[%s9 + $0x48] sm:$0xff]
    %v1360 = vld [vmem:[%s9 + $0x50] sm:$0xff]
    %v1361 = vld [vmem:[%s9 + $0x58] sm:$0xff]
    %v1362 = vld [vmem:[%s9 + $0x60] sm:$0xff]
    %v1363 = vld [vmem:[%s9 + $0x68] sm:$0xff]
    %v1364 = vld [vmem:[%s9 + $0x70] sm:$0xff]
    %v1365 = vld [vmem:[%s9 + $0x78] sm:$0xff]
    %v1366 = vsel %vm454, %v1347, 0.0
    %v1367 = vrot.slane %v1366, 4
    %v1368 = vadd.f32 %v1366, %v1367
    %v1369 = vrot.slane %v1368, 2
    %v1370 = vadd.f32 %v1368, %v1369
    %v1371 = vrot.slane %v1370, 1
    %v1372 = vadd.f32 %v1370, %v1371
    %1373 = vmatprep.subr.mxu0 0.0
    %1374 = vmatpush1.msra.mxu0 %v1350
    %1375 = vmatprep.subr.mxu0 0.0
    %1376 = vmatpush1.msra.mxu0 %v1351
    %1377 = vmatprep.subr.mxu0 0.0
    %1378 = vmatpush1.msra.mxu0 %v1352
    %1379 = vmatprep.subr.mxu0 0.0
    %1380 = vmatpush1.msra.mxu0 %v1353
    %1381 = vmatprep.subr.mxu0 0.0
    %1382 = vmatpush1.msra.mxu0 %v1354
    %1383 = vmatprep.subr.mxu0 0.0
    %1384 = vmatpush1.msra.mxu0 %v1355
    %1385 = vmatprep.subr.mxu0 0.0
    %1386 = vmatpush1.msra.mxu0 %v1356
    %1387 = vmatprep.subr.mxu0 0.0
    %1388 = vmatpush1.msra.mxu0 %v1357
    %1389 = vmatprep.subr.mxu0 0.0
    %1390 = vmatpush1.msra.mxu0 %v1358
    %1391 = vmatprep.subr.mxu0 0.0
    %1392 = vmatpush1.msra.mxu0 %v1359
    %1393 = vmatprep.subr.mxu0 0.0
    %1394 = vmatpush1.msra.mxu0 %v1360
    %1395 = vmatprep.subr.mxu0 0.0
    %1396 = vmatpush1.msra.mxu0 %v1361
    %1397 = vmatprep.subr.mxu0 0.0
    %1398 = vmatpush1.msra.mxu0 %v1362
    %1399 = vmatprep.subr.mxu0 0.0
    %1400 = vmatpush1.msra.mxu0 %v1363
    %1401 = vmatprep.subr.mxu0 0.0
    %1402 = vmatpush1.msra.mxu0 %v1364
    %1403 = vmatprep.subr.mxu0 0.0
    %1404 = vmatpush1.msra.mxu0 %v1365
    %1405 = vmatprep.subr.mxu0 0.0
    %1406 = vmatpush1.msra.mxu0 0.0
    %1407 = vmatprep.subr.mxu0 0.0
    %1408 = vmatpush1.msra.mxu0 0.0
    %1409 = vmatprep.subr.mxu0 0.0
    %1410 = vmatpush1.msra.mxu0 0.0
    %1411 = vmatprep.subr.mxu0 0.0
    %1412 = vmatpush1.msra.mxu0 0.0
    %1413 = vmatprep.subr.mxu0 0.0
    %1414 = vmatpush1.msra.mxu0 0.0
    %1415 = vmatprep.subr.mxu0 0.0
    %1416 = vmatpush1.msra.mxu0 0.0
    %1417 = vmatprep.subr.mxu0 0.0
    %1418 = vmatpush1.msra.mxu0 0.0
    %1419 = vmatprep.subr.mxu0 0.0
    %1420 = vmatpush1.msra.mxu0 0.0
    %1421 = vmatprep.subr.mxu0 0.0
    %1422 = vmatpush1.msra.mxu0 0.0
    %1423 = vmatprep.subr.mxu0 0.0
    %1424 = vmatpush1.msra.mxu0 0.0
    %1425 = vmatprep.subr.mxu0 0.0
    %1426 = vmatpush1.msra.mxu0 0.0
    %1427 = vmatprep.subr.mxu0 0.0
    %1428 = vmatpush1.msra.mxu0 0.0
    %1429 = vmatprep.subr.mxu0 0.0
    %1430 = vmatpush1.msra.mxu0 0.0
    %1431 = vmatprep.subr.mxu0 0.0
    %1432 = vmatpush1.msra.mxu0 0.0
    %1433 = vmatprep.subr.mxu0 0.0
    %1434 = vmatpush1.msra.mxu0 0.0
    %1435 = vmatprep.subr.mxu0 0.0
    %1436 = vmatpush1.msra.mxu0 0.0
    %1437 = vmatprep.mubr.f32.mxu0 0.0
    %1438 = vmatmul.mubr.f32.gmra.mrb[0].mxu0 %v1372
    %v1439 = vpop.f32.mrb[0].mxu0
    %v1440 = vadd.f32 0.0, %v1439
    %v1441 = vpop.f32.mrb[0].mxu0
    %1442 = vdwg.mxu0
    %v1443 = vmul.f32 %v1440, 0.03125
    %v1444 = vlaneseq
    %v1445 = vshrl.u32 %v1444, 7
    %v1446 = vsub.s32 0, %v1445
    %v1447 = vrot.slane %v1443, %v1446
    %v1448 = vsub.f32 %v1347, %v1447
    %v1449 = vmul.f32 %v1448, %v1448
    %v1450 = vsel %vm454, %v1449, 0.0
    %v1451 = vrot.slane %v1450, 4
    %v1452 = vadd.f32 %v1450, %v1451
    %v1453 = vrot.slane %v1452, 2
    %v1454 = vadd.f32 %v1452, %v1453
    %v1455 = vrot.slane %v1454, 1
    %v1456 = vadd.f32 %v1454, %v1455
    %1457 = vmatprep.subr.mxu0 0.0
    %1458 = vmatpush1.msra.mxu0 %v1350
    %1459 = vmatprep.subr.mxu0 0.0
    %1460 = vmatpush1.msra.mxu0 %v1351
    %1461 = vmatprep.subr.mxu0 0.0
    %1462 = vmatpush1.msra.mxu0 %v1352
    %1463 = vmatprep.subr.mxu0 0.0
    %1464 = vmatpush1.msra.mxu0 %v1353
    %1465 = vmatprep.subr.mxu0 0.0
    %1466 = vmatpush1.msra.mxu0 %v1354
    %1467 = vmatprep.subr.mxu0 0.0
    %1468 = vmatpush1.msra.mxu0 %v1355
    %1469 = vmatprep.subr.mxu0 0.0
    %1470 = vmatpush1.msra.mxu0 %v1356
    %1471 = vmatprep.subr.mxu0 0.0
    %1472 = vmatpush1.msra.mxu0 %v1357
    %1473 = vmatprep.subr.mxu0 0.0
    %1474 = vmatpush1.msra.mxu0 %v1358
    %1475 = vmatprep.subr.mxu0 0.0
    %1476 = vmatpush1.msra.mxu0 %v1359
    %1477 = vmatprep.subr.mxu0 0.0
    %1478 = vmatpush1.msra.mxu0 %v1360
    %1479 = vmatprep.subr.mxu0 0.0
    %1480 = vmatpush1.msra.mxu0 %v1361
    %1481 = vmatprep.subr.mxu0 0.0
    %1482 = vmatpush1.msra.mxu0 %v1362
    %1483 = vmatprep.subr.mxu0 0.0
    %1484 = vmatpush1.msra.mxu0 %v1363
    %1485 = vmatprep.subr.mxu0 0.0
    %1486 = vmatpush1.msra.mxu0 %v1364
    %1487 = vmatprep.subr.mxu0 0.0
    %1488 = vmatpush1.msra.mxu0 %v1365
    %1489 = vmatprep.subr.mxu0 0.0
    %1490 = vmatpush1.msra.mxu0 0.0
    %1491 = vmatprep.subr.mxu0 0.0
    %1492 = vmatpush1.msra.mxu0 0.0
    %1493 = vmatprep.subr.mxu0 0.0
    %1494 = vmatpush1.msra.mxu0 0.0
    %1495 = vmatprep.subr.mxu0 0.0
    %1496 = vmatpush1.msra.mxu0 0.0
    %1497 = vmatprep.subr.mxu0 0.0
    %1498 = vmatpush1.msra.mxu0 0.0
    %1499 = vmatprep.subr.mxu0 0.0
    %1500 = vmatpush1.msra.mxu0 0.0
    %1501 = vmatprep.subr.mxu0 0.0
    %1502 = vmatpush1.msra.mxu0 0.0
    %1503 = vmatprep.subr.mxu0 0.0
    %1504 = vmatpush1.msra.mxu0 0.0
    %1505 = vmatprep.subr.mxu0 0.0
    %1506 = vmatpush1.msra.mxu0 0.0
    %1507 = vmatprep.subr.mxu0 0.0
    %1508 = vmatpush1.msra.mxu0 0.0
    %1509 = vmatprep.subr.mxu0 0.0
    %1510 = vmatpush1.msra.mxu0 0.0
    %1511 = vmatprep.subr.mxu0 0.0
    %1512 = vmatpush1.msra.mxu0 0.0
    %1513 = vmatprep.subr.mxu0 0.0
    %1514 = vmatpush1.msra.mxu0 0.0
    %1515 = vmatprep.subr.mxu0 0.0
    %1516 = vmatpush1.msra.mxu0 0.0
    %1517 = vmatprep.subr.mxu0 0.0
    %1518 = vmatpush1.msra.mxu0 0.0
    %1519 = vmatprep.subr.mxu0 0.0
    %1520 = vmatpush1.msra.mxu0 0.0
    %1521 = vmatprep.mubr.f32.mxu0 0.0
    %1522 = vmatmul.mubr.f32.gmra.mrb[0].mxu0 %v1456
    %v1523 = vpop.f32.mrb[0].mxu0
    %v1524 = vadd.f32 0.0, %v1523
    %v1525 = vpop.f32.mrb[0].mxu0
    %1526 = vdwg.mxu0
    %v1527 = vmul.f32 %v1524, 0.03125
    %v1528 = vld [vmem:[%s10] sm:$0x1]
    %v1529 = vadd.f32 %v1527, 1e-05
    %v1530 = vrsqrt.pop %v1529
    %v1531 = vmul.f32 %v1528, %v1530
    %v1533 = vlaneseq
    %v1534 = vshrl.u32 %v1533, 7
    %v1535 = vsub.s32 0, %v1534
    %v1536 = vrot.slane %v1531, %v1535
    %v1538 = vmul.f32 %v1448, %v1536
    %v1539 = vld [vmem:[%s11] sm:$0x1]
    %v1541 = vlaneseq
    %v1542 = vshrl.u32 %v1541, 7
    %v1543 = vsub.s32 0, %v1542
    %v1544 = vrot.slane %v1539, %v1543
    %v1546 = vadd.f32 %v1538, %v1544
    %v1547 = vmax.f32 %v1546, 0.0
    %1548 = vst [vmem:[%s12] sm:$0x3] %v1547
    // Predicated region
    $region54: #{downscaling_forward.1} parent=1 // pred_check
      _
    $region55: #{downscaling_forward.1} parent=1 // pred_check_branch
      %1550 = sbr.rel (0) target = $region57
    $region56: #{downscaling_forward.1} parent=1 // pred_region
      _
    $region57: #{downscaling_forward.1} parent=1 // pred_fallthru
      _
    // Predicated region
    $region58: #{downscaling_forward.1} parent=1 // pred_check
      _
    $region59: #{downscaling_forward.1} parent=1 // pred_check_branch
      %1552 = sbr.rel (0) target = $region61
    $region60: #{downscaling_forward.1} parent=1 // pred_region
      _
    $region61: #{downscaling_forward.1} parent=1 // pred_fallthru
      _
    %1553 = vsyncpa [#allocation3], 1

</llo_original>
